<compile_context>
chip_gen: v5e
topology: v5e:2x2
jax: 0.10.0
libtpu: 0.0.40
codegen_flags: <defaults>
</compile_context>

<pallas_src>
import functools

import jax
import jax.numpy as jnp
from jax.experimental import pallas as pl
from jax.experimental.pallas import tpu as pltpu

HIDDEN1, HIDDEN2, HIDDEN3 = 1024, 512, 256


def _mlp_softmax_kernel(x_ref,
                        w1_ref, b1_ref,
                        w2_ref, b2_ref,
                        w3_ref, b3_ref,
                        w4_ref, b4_ref,
                        out_ref):
    # fc1 + relu (bf16 matmul operands, f32 accumulation; activation stored bf16)
    h = jnp.dot(x_ref[...].astype(jnp.bfloat16), w1_ref[...],
                preferred_element_type=jnp.float32)
    h = jnp.maximum(h + b1_ref[...], 0.0).astype(jnp.bfloat16)

    # fc2 + relu
    h = jnp.dot(h, w2_ref[...], preferred_element_type=jnp.float32)
    h = jnp.maximum(h + b2_ref[...], 0.0).astype(jnp.bfloat16)

    # fc3 + relu
    h = jnp.dot(h, w3_ref[...], preferred_element_type=jnp.float32)
    h = jnp.maximum(h + b3_ref[...], 0.0).astype(jnp.bfloat16)

    # fc4 (output dim lane-padded to 128; padded cols carry bias = -1e30)
    logits = jnp.dot(h, w4_ref[...], preferred_element_type=jnp.float32) + b4_ref[...]

    # numerically stable softmax over the (padded) feature axis;
    # padded columns contribute exp(-1e30 - m) == 0.
    m = jnp.max(logits, axis=-1, keepdims=True)
    e = jnp.exp(logits - m)
    denom = jnp.sum(e, axis=-1, keepdims=True)
    out_ref[...] = (e * pl.reciprocal(denom, approx=True)).astype(out_ref.dtype)


def prepare_params(params):
    """One-time (per model) prep: bf16 weights, f32 biases, lane-padded fc4.

    Hoisted out of the per-call wrapper so the casts/pads are not re-emitted on
    every forward call (latency-bound small-batch case).
    """
    output_dim = params["w4"].shape[1]
    out_pad = pl.cdiv(output_dim, 128) * 128
    prepared = {
        "w1": params["w1"].astype(jnp.bfloat16),
        "b1": params["b1"].astype(jnp.float32),
        "w2": params["w2"].astype(jnp.bfloat16),
        "b2": params["b2"].astype(jnp.float32),
        "w3": params["w3"].astype(jnp.bfloat16),
        "b3": params["b3"].astype(jnp.float32),
        # padded weight columns are zero; padded bias columns are -1e30 so the
        # extra logits vanish under softmax (keep b4 in f32!).
        "w4": jnp.pad(params["w4"],
                      ((0, 0), (0, out_pad - output_dim))).astype(jnp.bfloat16),
        "b4": jnp.pad(params["b4"].astype(jnp.float32),
                      ((0, 0), (0, out_pad - output_dim)),
                      constant_values=-1e30),
    }
    return prepared, output_dim


def _choose_tile_batch(batch, tile_batch):
    """Pick the batch tile size.

    - batch <= 128: one sublane-aligned tile covering the whole batch
      (single grid step; latency path).
    - batch  > 128: 128-multiple tiles, at most `tile_batch`, capped so the
      grid keeps >= 2 steps (lets v7x's two TensorCores split the batch).
    """
    if batch <= 128:
        return max(8, pl.cdiv(batch, 8) * 8)
    half = pl.cdiv(pl.cdiv(batch, 2), 128) * 128   # ~batch/2 rounded up to 128
    tb = min(tile_batch, half)
    tb = max(128, (tb // 128) * 128)               # 128-multiple, MXU-friendly
    return tb


def clarification_mlp_predictor(x, prepared, output_dim, *, tile_batch=512):
    """Forward pass.

    x        : (batch, input_dim) f32 prompt embeddings.
    prepared : dict from prepare_params().
    returns  : (batch, output_dim) f32 softmax probabilities.
    """
    batch, input_dim = x.shape
    out_pad = prepared["w4"].shape[1]

    # --- batch tiling ---------------------------------------------------------
    tb = _choose_tile_batch(batch, tile_batch)
    padded_batch = pl.cdiv(batch, tb) * tb
    if padded_batch != batch:
        x = jnp.pad(x, ((0, padded_batch - batch), (0, 0)))
    grid = (padded_batch // tb,)

    # Weights/biases: constant index_map (stay resident in VMEM) and
    # single-buffered -- no point double-buffering arrays that never change.
    def resident(a):
        return pl.BlockSpec(a.shape, lambda i: (0,) * a.ndim,
                            pipeline_mode=pl.Buffered(1))

    # --- cost hint for XLA's scheduler ---------------------------------------
    flops = 2 * padded_batch * (input_dim * HIDDEN1 + HIDDEN1 * HIDDEN2
                                + HIDDEN2 * HIDDEN3 + HIDDEN3 * out_pad)
    weight_bytes = 2 * (input_dim * HIDDEN1 + HIDDEN1 * HIDDEN2
                        + HIDDEN2 * HIDDEN3 + HIDDEN3 * out_pad)
    bias_bytes = 4 * (HIDDEN1 + HIDDEN2 + HIDDEN3 + out_pad)
    io_bytes = 4 * padded_batch * (input_dim + out_pad)
    cost = pl.CostEstimate(flops=flops,
                           transcendentals=padded_batch * out_pad,
                           bytes_accessed=weight_bytes + bias_bytes + io_bytes)

    out_padded = pl.pallas_call(
        _mlp_softmax_kernel,
        out_shape=jax.ShapeDtypeStruct((padded_batch, out_pad), jnp.float32),
        grid=grid,
        in_specs=[
            pl.BlockSpec((tb, input_dim), lambda i: (i, 0)),   # x moves with grid
            resident(prepared["w1"]), resident(prepared["b1"]),
            resident(prepared["w2"]), resident(prepared["b2"]),
            resident(prepared["w3"]), resident(prepared["b3"]),
            resident(prepared["w4"]), resident(prepared["b4"]),
        ],
        out_specs=pl.BlockSpec((tb, out_pad), lambda i: (i, 0)),
        compiler_params=pltpu.CompilerParams(
            dimension_semantics=("parallel",),   # split batch across v7x TCs
            vmem_limit_bytes=32 << 20,           # sized for tb up to ~1024
        ),
        cost_estimate=cost,
    )(x,
      prepared["w1"], prepared["b1"],
      prepared["w2"], prepared["b2"],
      prepared["w3"], prepared["b3"],
      prepared["w4"], prepared["b4"])

    return out_padded[:batch, :output_dim]


def predict(x, prepared, output_dim):
    """Mirrors ClarificationMLPPredictor.predict: (probabilities, argmax indices)."""
    probs = clarification_mlp_predictor(x, prepared, output_dim)
    return probs, jnp.argmax(probs, axis=1)      # argmax is plain JAX glue


def init_params(key, input_dim, output_dim):
    dims = [(input_dim, HIDDEN1), (HIDDEN1, HIDDEN2),
            (HIDDEN2, HIDDEN3), (HIDDEN3, output_dim)]
    params = {}
    for i, (fan_in, fan_out) in enumerate(dims, start=1):
        key, kw, kb = jax.random.split(key, 3)
        # PyTorch Linear default init: U(-1/sqrt(fan_in), 1/sqrt(fan_in))
        bound = 1.0 / (fan_in ** 0.5)
        params[f"w{i}"] = jax.random.uniform(
            kw, (fan_in, fan_out), jnp.float32, minval=-bound, maxval=bound)
        params[f"b{i}"] = jax.random.uniform(
            kb, (1, fan_out), jnp.float32, minval=-bound, maxval=bound)
    return params


def reference_forward_bf16(x, params):
    """Pure-JAX reference mirroring kernel numerics (bf16 matmul operands, f32 acc)."""
    dot = functools.partial(jnp.dot, preferred_element_type=jnp.float32)
    cast = lambda a: a.astype(jnp.bfloat16)
    h = jnp.maximum(dot(cast(x), cast(params["w1"])) + params["b1"], 0.0)
    h = jnp.maximum(dot(cast(h), cast(params["w2"])) + params["b2"], 0.0)
    h = jnp.maximum(dot(cast(h), cast(params["w3"])) + params["b3"], 0.0)
    logits = dot(cast(h), cast(params["w4"])) + params["b4"]
    return jax.nn.softmax(logits, axis=1)


if __name__ == "__main__":
    key = jax.random.PRNGKey(0)
    input_dim, output_dim = 32, 8
    key, kp = jax.random.split(key)
    params = init_params(kp, input_dim, output_dim)
    prepared, odim = prepare_params(params)

    # --- small-batch latency path (single grid step) --------------------------
    key, kx = jax.random.split(key)
    x_small = jax.random.normal(kx, (2, input_dim), dtype=jnp.float32)
    probs, idx = predict(x_small, prepared, odim)
    probs = jax.block_until_ready(probs)
    ref = reference_forward_bf16(x_small, params)
    assert probs.shape == (2, output_dim)
    assert jnp.allclose(probs, ref, atol=2e-3, rtol=2e-3)
    assert jnp.allclose(jnp.sum(probs, axis=1), 1.0, atol=2e-3)
    assert idx.shape == (2,)

    # --- multi-tile path (batch not a tile multiple -> pad/slice, grid >= 2) --
    key, kx = jax.random.split(key)
    x_big = jax.random.normal(kx, (300, input_dim), dtype=jnp.float32)
    probs_big = jax.block_until_ready(
        clarification_mlp_predictor(x_big, prepared, odim))
    ref_big = reference_forward_bf16(x_big, params)
    assert probs_big.shape == (300, output_dim)
    assert jnp.allclose(probs_big, ref_big, atol=2e-3, rtol=2e-3)
    assert jnp.allclose(jnp.sum(probs_big, axis=1), 1.0, atol=2e-3)

    print("KERNEL_OK")
</pallas_src>

<mosaic_0001>
module attributes {stable_mosaic.version = 11 : i64} {
  func.func @_mlp_softmax_kernel(%arg0: i32, %arg1: memref<8x32xf32, #tpu.memory_space<vmem>>, %arg2: memref<32x1024xbf16, #tpu.memory_space<vmem>>, %arg3: memref<1x1024xf32, #tpu.memory_space<vmem>>, %arg4: memref<1024x512xbf16, #tpu.memory_space<vmem>>, %arg5: memref<1x512xf32, #tpu.memory_space<vmem>>, %arg6: memref<512x256xbf16, #tpu.memory_space<vmem>>, %arg7: memref<1x256xf32, #tpu.memory_space<vmem>>, %arg8: memref<256x128xbf16, #tpu.memory_space<vmem>>, %arg9: memref<1x128xf32, #tpu.memory_space<vmem>>, %arg10: memref<8x128xf32, #tpu.memory_space<vmem>>) attributes {dimension_semantics = [#tpu.dimension_semantics<parallel>], iteration_bounds = array<i64: 1>, scalar_prefetch = 0 : i64, scratch_operands = 0 : i64, tpu.core_type = #tpu.core_type<tc>, window_params = [{transform_indices = @transform_0, window_bounds = array<i64: 8, 32>}, {pipeline_mode = #tpu.pipeline_mode<synchronous>, transform_indices = @transform_1, window_bounds = array<i64: 32, 1024>}, {pipeline_mode = #tpu.pipeline_mode<synchronous>, transform_indices = @transform_2, window_bounds = array<i64: 1, 1024>}, {pipeline_mode = #tpu.pipeline_mode<synchronous>, transform_indices = @transform_3, window_bounds = array<i64: 1024, 512>}, {pipeline_mode = #tpu.pipeline_mode<synchronous>, transform_indices = @transform_4, window_bounds = array<i64: 1, 512>}, {pipeline_mode = #tpu.pipeline_mode<synchronous>, transform_indices = @transform_5, window_bounds = array<i64: 512, 256>}, {pipeline_mode = #tpu.pipeline_mode<synchronous>, transform_indices = @transform_6, window_bounds = array<i64: 1, 256>}, {pipeline_mode = #tpu.pipeline_mode<synchronous>, transform_indices = @transform_7, window_bounds = array<i64: 256, 128>}, {pipeline_mode = #tpu.pipeline_mode<synchronous>, transform_indices = @transform_8, window_bounds = array<i64: 1, 128>}, {transform_indices = @transform_9, window_bounds = array<i64: 8, 128>}]} {
    %c0 = arith.constant 0 : index
    %c0_0 = arith.constant 0 : index
    %0 = vector.load %arg1[%c0, %c0_0] : memref<8x32xf32, #tpu.memory_space<vmem>>, vector<8x32xf32>
    %1 = arith.truncf %0 : vector<8x32xf32> to vector<8x32xbf16>
    %c0_1 = arith.constant 0 : index
    %c0_2 = arith.constant 0 : index
    %2 = vector.load %arg2[%c0_1, %c0_2] : memref<32x1024xbf16, #tpu.memory_space<vmem>>, vector<32x1024xbf16>
    %cst = arith.constant dense<0.000000e+00> : vector<8x1024xf32>
    %3 = tpu.matmul %1, %2, %cst {dimension_numbers = #tpu.dot_dimension_numbers<[1], [0], [0], [1], [0, 0, 1, 1], [], []>} : vector<8x32xbf16>, vector<32x1024xbf16>, vector<8x1024xf32> -> vector<8x1024xf32>
    %c0_3 = arith.constant 0 : index
    %c0_4 = arith.constant 0 : index
    %4 = vector.load %arg3[%c0_3, %c0_4] : memref<1x1024xf32, #tpu.memory_space<vmem>>, vector<1x1024xf32>
    %5 = vector.broadcast %4 : vector<1x1024xf32> to vector<8x1024xf32>
    %6 = arith.addf %3, %5 : vector<8x1024xf32>
    %cst_5 = arith.constant 0.000000e+00 : f32
    %7 = vector.broadcast %cst_5 : f32 to vector<8x1024xf32>
    %8 = arith.maximumf %6, %7 : vector<8x1024xf32>
    %9 = arith.truncf %8 : vector<8x1024xf32> to vector<8x1024xbf16>
    %c0_6 = arith.constant 0 : index
    %c0_7 = arith.constant 0 : index
    %10 = vector.load %arg4[%c0_6, %c0_7] : memref<1024x512xbf16, #tpu.memory_space<vmem>>, vector<1024x512xbf16>
    %cst_8 = arith.constant dense<0.000000e+00> : vector<8x512xf32>
    %11 = tpu.matmul %9, %10, %cst_8 {dimension_numbers = #tpu.dot_dimension_numbers<[1], [0], [0], [1], [0, 0, 1, 1], [], []>} : vector<8x1024xbf16>, vector<1024x512xbf16>, vector<8x512xf32> -> vector<8x512xf32>
    %c0_9 = arith.constant 0 : index
    %c0_10 = arith.constant 0 : index
    %12 = vector.load %arg5[%c0_9, %c0_10] : memref<1x512xf32, #tpu.memory_space<vmem>>, vector<1x512xf32>
    %13 = vector.broadcast %12 : vector<1x512xf32> to vector<8x512xf32>
    %14 = arith.addf %11, %13 : vector<8x512xf32>
    %cst_11 = arith.constant 0.000000e+00 : f32
    %15 = vector.broadcast %cst_11 : f32 to vector<8x512xf32>
    %16 = arith.maximumf %14, %15 : vector<8x512xf32>
    %17 = arith.truncf %16 : vector<8x512xf32> to vector<8x512xbf16>
    %c0_12 = arith.constant 0 : index
    %c0_13 = arith.constant 0 : index
    %18 = vector.load %arg6[%c0_12, %c0_13] : memref<512x256xbf16, #tpu.memory_space<vmem>>, vector<512x256xbf16>
    %cst_14 = arith.constant dense<0.000000e+00> : vector<8x256xf32>
    %19 = tpu.matmul %17, %18, %cst_14 {dimension_numbers = #tpu.dot_dimension_numbers<[1], [0], [0], [1], [0, 0, 1, 1], [], []>} : vector<8x512xbf16>, vector<512x256xbf16>, vector<8x256xf32> -> vector<8x256xf32>
    %c0_15 = arith.constant 0 : index
    %c0_16 = arith.constant 0 : index
    %20 = vector.load %arg7[%c0_15, %c0_16] : memref<1x256xf32, #tpu.memory_space<vmem>>, vector<1x256xf32>
    %21 = vector.broadcast %20 : vector<1x256xf32> to vector<8x256xf32>
    %22 = arith.addf %19, %21 : vector<8x256xf32>
    %cst_17 = arith.constant 0.000000e+00 : f32
    %23 = vector.broadcast %cst_17 : f32 to vector<8x256xf32>
    %24 = arith.maximumf %22, %23 : vector<8x256xf32>
    %25 = arith.truncf %24 : vector<8x256xf32> to vector<8x256xbf16>
    %c0_18 = arith.constant 0 : index
    %c0_19 = arith.constant 0 : index
    %26 = vector.load %arg8[%c0_18, %c0_19] : memref<256x128xbf16, #tpu.memory_space<vmem>>, vector<256x128xbf16>
    %cst_20 = arith.constant dense<0.000000e+00> : vector<8x128xf32>
    %27 = tpu.matmul %25, %26, %cst_20 {dimension_numbers = #tpu.dot_dimension_numbers<[1], [0], [0], [1], [0, 0, 1, 1], [], []>} : vector<8x256xbf16>, vector<256x128xbf16>, vector<8x128xf32> -> vector<8x128xf32>
    %c0_21 = arith.constant 0 : index
    %c0_22 = arith.constant 0 : index
    %28 = vector.load %arg9[%c0_21, %c0_22] : memref<1x128xf32, #tpu.memory_space<vmem>>, vector<1x128xf32>
    %29 = vector.broadcast %28 : vector<1x128xf32> to vector<8x128xf32>
    %30 = arith.addf %27, %29 : vector<8x128xf32>
    %cst_23 = arith.constant dense<0xFF800000> : vector<8xf32>
    %31 = vector.multi_reduction <maximumf>, %30, %cst_23 [1] : vector<8x128xf32> to vector<8xf32>
    %32 = vector.shape_cast %31 : vector<8xf32> to vector<8x1xf32>
    %33 = vector.broadcast %32 : vector<8x1xf32> to vector<8x128xf32>
    %34 = arith.subf %30, %33 : vector<8x128xf32>
    %35 = math.exp %34 : vector<8x128xf32>
    %cst_24 = arith.constant dense<0.000000e+00> : vector<8xf32>
    %36 = vector.multi_reduction <add>, %35, %cst_24 [1] : vector<8x128xf32> to vector<8xf32>
    %37 = vector.shape_cast %36 : vector<8xf32> to vector<8x1xf32>
    %38 = tpu.reciprocal %37 {approx = true} : vector<8x1xf32> -> vector<8x1xf32>
    %39 = vector.broadcast %38 : vector<8x1xf32> to vector<8x128xf32>
    %40 = arith.mulf %35, %39 : vector<8x128xf32>
    %c0_25 = arith.constant 0 : index
    %c0_26 = arith.constant 0 : index
    %41 = vector.load %arg10[%c0_25, %c0_26] : memref<8x128xf32, #tpu.memory_space<vmem>>, vector<8x128xf32>
    tpu.vector_store %arg10[%c0_25, %c0_26], %40 {strides = array<i32>} : memref<8x128xf32, #tpu.memory_space<vmem>>, vector<8x128xf32>,
    return
  }
  func.func @transform_0(%arg0: i32) -> (i32, i32) {
    %c0_i32 = arith.constant 0 : i32
    %c0_i32_0 = arith.constant 0 : i32
    return %arg0, %c0_i32 : i32, i32
  }
  func.func @transform_1(%arg0: i32) -> (i32, i32) {
    %c0_i32 = arith.constant 0 : i32
    %c0_i32_0 = arith.constant 0 : i32
    %c0_i32_1 = arith.constant 0 : i32
    return %c0_i32, %c0_i32_0 : i32, i32
  }
  func.func @transform_2(%arg0: i32) -> (i32, i32) {
    %c0_i32 = arith.constant 0 : i32
    %c0_i32_0 = arith.constant 0 : i32
    %c0_i32_1 = arith.constant 0 : i32
    return %c0_i32, %c0_i32_0 : i32, i32
  }
  func.func @transform_3(%arg0: i32) -> (i32, i32) {
    %c0_i32 = arith.constant 0 : i32
    %c0_i32_0 = arith.constant 0 : i32
    %c0_i32_1 = arith.constant 0 : i32
    return %c0_i32, %c0_i32_0 : i32, i32
  }
  func.func @transform_4(%arg0: i32) -> (i32, i32) {
    %c0_i32 = arith.constant 0 : i32
    %c0_i32_0 = arith.constant 0 : i32
    %c0_i32_1 = arith.constant 0 : i32
    return %c0_i32, %c0_i32_0 : i32, i32
  }
  func.func @transform_5(%arg0: i32) -> (i32, i32) {
    %c0_i32 = arith.constant 0 : i32
    %c0_i32_0 = arith.constant 0 : i32
    %c0_i32_1 = arith.constant 0 : i32
    return %c0_i32, %c0_i32_0 : i32, i32
  }
  func.func @transform_6(%arg0: i32) -> (i32, i32) {
    %c0_i32 = arith.constant 0 : i32
    %c0_i32_0 = arith.constant 0 : i32
    %c0_i32_1 = arith.constant 0 : i32
    return %c0_i32, %c0_i32_0 : i32, i32
  }
  func.func @transform_7(%arg0: i32) -> (i32, i32) {
    %c0_i32 = arith.constant 0 : i32
    %c0_i32_0 = arith.constant 0 : i32
    %c0_i32_1 = arith.constant 0 : i32
    return %c0_i32, %c0_i32_0 : i32, i32
  }
  func.func @transform_8(%arg0: i32) -> (i32, i32) {
    %c0_i32 = arith.constant 0 : i32
    %c0_i32_0 = arith.constant 0 : i32
    %c0_i32_1 = arith.constant 0 : i32
    return %c0_i32, %c0_i32_0 : i32, i32
  }
  func.func @transform_9(%arg0: i32) -> (i32, i32) {
    %c0_i32 = arith.constant 0 : i32
    %c0_i32_0 = arith.constant 0 : i32
    return %arg0, %c0_i32 : i32, i32
  }
}

</mosaic_0001>

<llo_original>
// kernel: tpu_custom_call.1
$region0: #{tpu_custom_call.1}
  #allocation0 [shape = 'u32[]', space=smem, size = 0x4, offset = 0x4, fixed_abs, tag = 'smem constant byte address 0x4 - core index']
  #allocation1 [shape = 'u32[72,128]{1,0:T(1,128)}', space=vmem, size = 0x9000, scoped, tag = 'internal scratch']
  %s0 = inlined_call_operand.hbm [shape: f32[8,32], index: 0, kind: input, shape index: {}]
  %s1 = inlined_call_operand.hbm [shape: bf16[32,1024], index: 1, kind: input, shape index: {}]
  %s2 = inlined_call_operand.hbm [shape: f32[1,1024], index: 2, kind: input, shape index: {}]
  %s3 = inlined_call_operand.hbm [shape: bf16[1024,512], index: 3, kind: input, shape index: {}]
  %s4 = inlined_call_operand.hbm [shape: f32[1,512], index: 4, kind: input, shape index: {}]
  %s5 = inlined_call_operand.hbm [shape: bf16[512,256], index: 5, kind: input, shape index: {}]
  %s6 = inlined_call_operand.vmem [shape: f32[1,256], index: 6, kind: input, shape index: {}]
  %s7 = inlined_call_operand.hbm [shape: bf16[256,128], index: 7, kind: input, shape index: {}]
  %s8 = inlined_call_operand.vmem [shape: f32[1,128], index: 8, kind: input, shape index: {}]
  %s9 = inlined_call_operand.hbm [shape: f32[8,128], index: 9, kind: output, shape index: {}]
  %s10 = sld [smem:[#allocation0]]
  $region74: #{tpu_custom_call.1} parent=0
    _
  %s12 = ssub.s32 1, %s10
  %s13 = scalar_select 0, %s12, %s10
  $region1: #{tpu_custom_call.1} parent=0
    #allocation2 [shape = 'u8[4096]{0}', space=vmem, size = 0x1000, scoped, tag = 'input window, operand 0, single buffered']
    #allocation3 [shape = 's32[1]{0}', space=sflag, size = 0x4, scoped, tag = 'scoped memory for tpu_custom_call.1']
    #allocation4 [shape = 's32[1]{0}', space=sflag, size = 0x4, scoped, tag = 'scoped memory for tpu_custom_call.1']
    #allocation5 [shape = 'u8[65536]{0}', space=vmem, size = 0x10000, scoped, tag = 'input window, operand 1, single buffered']
    #allocation6 [shape = 's32[1]{0}', space=sflag, size = 0x4, scoped, tag = 'scoped memory for tpu_custom_call.1']
    #allocation7 [shape = 'u8[4096]{0}', space=vmem, size = 0x1000, scoped, tag = 'input window, operand 2, single buffered']
    #allocation8 [shape = 'u8[1048576]{0}', space=vmem, size = 0x100000, scoped, tag = 'input window, operand 3, single buffered']
    #allocation9 [shape = 's32[1]{0}', space=sflag, size = 0x4, scoped, tag = 'scoped memory for tpu_custom_call.1']
    #allocation10 [shape = 'u8[2048]{0}', space=vmem, size = 0x800, scoped, tag = 'input window, operand 4, single buffered']
    #allocation11 [shape = 'u8[262144]{0}', space=vmem, size = 0x40000, scoped, tag = 'input window, operand 5, single buffered']
    #allocation12 [shape = 's32[1]{0}', space=sflag, size = 0x4, scoped, tag = 'scoped memory for tpu_custom_call.1']
    #allocation13 [shape = 'u8[65536]{0}', space=vmem, size = 0x10000, scoped, tag = 'input window, operand 7, single buffered']
    #allocation14 [shape = 'u8[4096]{0}', space=vmem, size = 0x1000, scoped, tag = 'output window, operand 0, single buffered']
    %14 = vsyncpa [#allocation3], 0
    %15 = vsyncpa [#allocation6], 0
    %16 = vsyncpa [#allocation9], 0
    %17 = vsyncpa [#allocation12], 0
    %18 = vsyncpa [#allocation4], 0
    // Predicated region
    $region2: #{tpu_custom_call.1} parent=1 // pred_check
      _
    $region3: #{tpu_custom_call.1} parent=1 // pred_check_branch
      %20 = sbr.rel (0) target = $region5
    $region4: #{tpu_custom_call.1} parent=1 // pred_region
      %22 = vsyncadd [#allocation3], 0
      %s24 = sshll.u32 %s0, 4
      %s25 = int_to_ptr.hbm [resolvable:$true] %s24
      %s26 = sshll.u32 [#allocation2], 4
      %s27 = int_to_ptr.vmem [resolvable:$true] %s26
      %29 = dma.hbm_to_vmem [thread:$0]  %s25, 128, %s27, [#allocation3]
    $region5: #{tpu_custom_call.1} parent=1 // pred_fallthru
      _
    // Predicated region
    $region6: #{tpu_custom_call.1} parent=1 // pred_check
      _
    $region7: #{tpu_custom_call.1} parent=1 // pred_check_branch
      %31 = sbr.rel (0) target = $region9
    $region8: #{tpu_custom_call.1} parent=1 // pred_region
      %33 = vsyncadd [#allocation6], 0
      %s34 = sshll.u32 %s1, 4
      %s35 = int_to_ptr.hbm [resolvable:$true] %s34
      %s36 = sshll.u32 [#allocation5], 4
      %s37 = int_to_ptr.vmem [resolvable:$true] %s36
      %42 = dma.hbm_to_vmem [thread:$0]  %s35, 2048, %s37, [#allocation6], 512, 512, 32
    $region9: #{tpu_custom_call.1} parent=1 // pred_fallthru
      _
    // Predicated region
    $region10: #{tpu_custom_call.1} parent=1 // pred_check
      _
    $region11: #{tpu_custom_call.1} parent=1 // pred_check_branch
      %44 = sbr.rel (0) target = $region13
    $region12: #{tpu_custom_call.1} parent=1 // pred_region
      %46 = vsyncadd [#allocation6], 0
      %s48 = sshll.u32 %s2, 4
      %s49 = int_to_ptr.hbm [resolvable:$true] %s48
      %s50 = sshll.u32 [#allocation7], 4
      %s51 = int_to_ptr.vmem [resolvable:$true] %s50
      %53 = dma.hbm_to_vmem [thread:$0]  %s49, 128, %s51, [#allocation6]
    $region13: #{tpu_custom_call.1} parent=1 // pred_fallthru
      _
    // Predicated region
    $region14: #{tpu_custom_call.1} parent=1 // pred_check
      _
    $region15: #{tpu_custom_call.1} parent=1 // pred_check_branch
      %55 = sbr.rel (0) target = $region17
    $region16: #{tpu_custom_call.1} parent=1 // pred_region
      %57 = vsyncadd [#allocation9], 0
      %s58 = sshll.u32 %s3, 4
      %s59 = int_to_ptr.hbm [resolvable:$true] %s58
      %s60 = sshll.u32 [#allocation8], 4
      %s61 = int_to_ptr.vmem [resolvable:$true] %s60
      %66 = dma.hbm_to_vmem [thread:$0]  %s59, 32768, %s61, [#allocation9], 256, 256, 16
    $region17: #{tpu_custom_call.1} parent=1 // pred_fallthru
      _
    // Predicated region
    $region18: #{tpu_custom_call.1} parent=1 // pred_check
      _
    $region19: #{tpu_custom_call.1} parent=1 // pred_check_branch
      %68 = sbr.rel (0) target = $region21
    $region20: #{tpu_custom_call.1} parent=1 // pred_region
      %70 = vsyncadd [#allocation9], 0
      %s72 = sshll.u32 %s4, 4
      %s73 = int_to_ptr.hbm [resolvable:$true] %s72
      %s74 = sshll.u32 [#allocation10], 4
      %s75 = int_to_ptr.vmem [resolvable:$true] %s74
      %77 = dma.hbm_to_vmem [thread:$0]  %s73, 64, %s75, [#allocation9]
    $region21: #{tpu_custom_call.1} parent=1 // pred_fallthru
      _
    // Predicated region
    $region22: #{tpu_custom_call.1} parent=1 // pred_check
      _
    $region23: #{tpu_custom_call.1} parent=1 // pred_check_branch
      %79 = sbr.rel (0) target = $region25
    $region24: #{tpu_custom_call.1} parent=1 // pred_region
      %81 = vsyncadd [#allocation12], 0
      %s82 = sshll.u32 %s5, 4
      %s83 = int_to_ptr.hbm [resolvable:$true] %s82
      %s84 = sshll.u32 [#allocation11], 4
      %s85 = int_to_ptr.vmem [resolvable:$true] %s84
      %90 = dma.hbm_to_vmem [thread:$0]  %s83, 8192, %s85, [#allocation12], 128, 128, 8
    $region25: #{tpu_custom_call.1} parent=1 // pred_fallthru
      _
    // Predicated region
    $region26: #{tpu_custom_call.1} parent=1 // pred_check
      _
    $region27: #{tpu_custom_call.1} parent=1 // pred_check_branch
      %92 = sbr.rel (0) target = $region29
    $region28: #{tpu_custom_call.1} parent=1 // pred_region
      _
    $region29: #{tpu_custom_call.1} parent=1 // pred_fallthru
      _
    // Predicated region
    $region30: #{tpu_custom_call.1} parent=1 // pred_check
      _
    $region31: #{tpu_custom_call.1} parent=1 // pred_check_branch
      %94 = sbr.rel (0) target = $region33
    $region32: #{tpu_custom_call.1} parent=1 // pred_region
      %96 = vsyncadd [#allocation12], 0
      %s97 = sshll.u32 %s7, 4
      %s98 = int_to_ptr.hbm [resolvable:$true] %s97
      %s99 = sshll.u32 [#allocation13], 4
      %s100 = int_to_ptr.vmem [resolvable:$true] %s99
      %105 = dma.hbm_to_vmem [thread:$0]  %s98, 2048, %s100, [#allocation12], 64, 64, 4
    $region33: #{tpu_custom_call.1} parent=1 // pred_fallthru
      _
    // Predicated region
    $region34: #{tpu_custom_call.1} parent=1 // pred_check
      _
    $region35: #{tpu_custom_call.1} parent=1 // pred_check_branch
      %107 = sbr.rel (0) target = $region37
    $region36: #{tpu_custom_call.1} parent=1 // pred_region
      _
    $region37: #{tpu_custom_call.1} parent=1 // pred_fallthru
      _
    // Predicated region
    $region38: #{tpu_custom_call.1} parent=1 // pred_check
      _
    $region39: #{tpu_custom_call.1} parent=1 // pred_check_branch
      %109 = sbr.rel (0) target = $region41
    $region40: #{tpu_custom_call.1} parent=1 // pred_region
      %111 = dma.done [#allocation3], 128
    $region41: #{tpu_custom_call.1} parent=1 // pred_fallthru
      _
    // Predicated region
    $region42: #{tpu_custom_call.1} parent=1 // pred_check
      _
    $region43: #{tpu_custom_call.1} parent=1 // pred_check_branch
      %113 = sbr.rel (0) target = $region45
    $region44: #{tpu_custom_call.1} parent=1 // pred_region
      %115 = dma.done [#allocation6], 2048
    $region45: #{tpu_custom_call.1} parent=1 // pred_fallthru
      _
    // Predicated region
    $region46: #{tpu_custom_call.1} parent=1 // pred_check
      _
    $region47: #{tpu_custom_call.1} parent=1 // pred_check_branch
      %117 = sbr.rel (0) target = $region49
    $region48: #{tpu_custom_call.1} parent=1 // pred_region
      %119 = dma.done [#allocation6], 128
    $region49: #{tpu_custom_call.1} parent=1 // pred_fallthru
      _
    // Predicated region
    $region50: #{tpu_custom_call.1} parent=1 // pred_check
      _
    $region51: #{tpu_custom_call.1} parent=1 // pred_check_branch
      %121 = sbr.rel (0) target = $region53
    $region52: #{tpu_custom_call.1} parent=1 // pred_region
      %123 = dma.done [#allocation9], 32768
    $region53: #{tpu_custom_call.1} parent=1 // pred_fallthru
      _
    // Predicated region
    $region54: #{tpu_custom_call.1} parent=1 // pred_check
      _
    $region55: #{tpu_custom_call.1} parent=1 // pred_check_branch
      %125 = sbr.rel (0) target = $region57
    $region56: #{tpu_custom_call.1} parent=1 // pred_region
      %127 = dma.done [#allocation9], 64
    $region57: #{tpu_custom_call.1} parent=1 // pred_fallthru
      _
    // Predicated region
    $region58: #{tpu_custom_call.1} parent=1 // pred_check
      _
    $region59: #{tpu_custom_call.1} parent=1 // pred_check_branch
      %129 = sbr.rel (0) target = $region61
    $region60: #{tpu_custom_call.1} parent=1 // pred_region
      %131 = dma.done [#allocation12], 8192
    $region61: #{tpu_custom_call.1} parent=1 // pred_fallthru
      _
    // Predicated region
    $region62: #{tpu_custom_call.1} parent=1 // pred_check
      _
    $region63: #{tpu_custom_call.1} parent=1 // pred_check_branch
      %133 = sbr.rel (0) target = $region65
    $region64: #{tpu_custom_call.1} parent=1 // pred_region
      %135 = dma.done [#allocation12], 2048
    $region65: #{tpu_custom_call.1} parent=1 // pred_fallthru
      _
    %v137 = vld [vmem:[#allocation2] sm:$0xff]
    %v138 = vpack.c.bf16 %v137, %v137
    %v139 = vld [vmem:[#allocation5] sm:$0xff]
    %v140 = vld [vmem:[#allocation5 + $0x8] sm:$0xff]
    %v141 = vld [vmem:[#allocation5 + $0x10] sm:$0xff]
    %v142 = vld [vmem:[#allocation5 + $0x18] sm:$0xff]
    %v143 = vld [vmem:[#allocation5 + $0x20] sm:$0xff]
    %v144 = vld [vmem:[#allocation5 + $0x28] sm:$0xff]
    %v145 = vld [vmem:[#allocation5 + $0x30] sm:$0xff]
    %v146 = vld [vmem:[#allocation5 + $0x38] sm:$0xff]
    %v147 = vld [vmem:[#allocation5 + $0x40] sm:$0xff]
    %v148 = vld [vmem:[#allocation5 + $0x48] sm:$0xff]
    %v149 = vld [vmem:[#allocation5 + $0x50] sm:$0xff]
    %v150 = vld [vmem:[#allocation5 + $0x58] sm:$0xff]
    %v151 = vld [vmem:[#allocation5 + $0x60] sm:$0xff]
    %v152 = vld [vmem:[#allocation5 + $0x68] sm:$0xff]
    %v153 = vld [vmem:[#allocation5 + $0x70] sm:$0xff]
    %v154 = vld [vmem:[#allocation5 + $0x78] sm:$0xff]
    %v155 = vld [vmem:[#allocation7] sm:$0xff]
    %v157 = vperm.slane %v155, 0
    %v158 = vperm.slane %v155, 1
    %v159 = vperm.slane %v155, 2
    %v160 = vperm.slane %v155, 3
    %v161 = vperm.slane %v155, 4
    %v162 = vperm.slane %v155, 5
    %v163 = vperm.slane %v155, 6
    %v164 = vperm.slane %v155, 7
    %v189 = vunpack.c.l.b16 %v139
    %v190 = vunpack.c.h.b16 %v139
    %v191 = vunpack.c.l.b16 %v140
    %v192 = vunpack.c.h.b16 %v140
    %v193 = vunpack.c.l.b16 %v141
    %v194 = vunpack.c.h.b16 %v141
    %v195 = vunpack.c.l.b16 %v142
    %v196 = vunpack.c.h.b16 %v142
    %v197 = vunpack.c.l.b16 %v143
    %v198 = vunpack.c.h.b16 %v143
    %v199 = vunpack.c.l.b16 %v144
    %v200 = vunpack.c.h.b16 %v144
    %v201 = vunpack.c.l.b16 %v145
    %v202 = vunpack.c.h.b16 %v145
    %v203 = vunpack.c.l.b16 %v146
    %v204 = vunpack.c.h.b16 %v146
    %v205 = vunpack.c.l.b16 %v147
    %v206 = vunpack.c.h.b16 %v147
    %v207 = vunpack.c.l.b16 %v148
    %v208 = vunpack.c.h.b16 %v148
    %v209 = vunpack.c.l.b16 %v149
    %v210 = vunpack.c.h.b16 %v149
    %v211 = vunpack.c.l.b16 %v150
    %v212 = vunpack.c.h.b16 %v150
    %v213 = vunpack.c.l.b16 %v151
    %v214 = vunpack.c.h.b16 %v151
    %v215 = vunpack.c.l.b16 %v152
    %v216 = vunpack.c.h.b16 %v152
    %v217 = vunpack.c.l.b16 %v153
    %v218 = vunpack.c.h.b16 %v153
    %v219 = vunpack.c.l.b16 %v154
    %v220 = vunpack.c.h.b16 %v154
    %v221 = vpack.c.b16 %v197, %v189
    %v222 = vpack.c.b16 %v198, %v190
    %v223 = vpack.c.b16 %v199, %v191
    %v224 = vpack.c.b16 %v200, %v192
    %v225 = vpack.c.b16 %v201, %v193
    %v226 = vpack.c.b16 %v202, %v194
    %v227 = vpack.c.b16 %v203, %v195
    %v228 = vpack.c.b16 %v204, %v196
    %v229 = vpack.c.b16 %v213, %v205
    %v230 = vpack.c.b16 %v214, %v206
    %v231 = vpack.c.b16 %v215, %v207
    %v232 = vpack.c.b16 %v216, %v208
    %v233 = vpack.c.b16 %v217, %v209
    %v234 = vpack.c.b16 %v218, %v210
    %v235 = vpack.c.b16 %v219, %v211
    %v236 = vpack.c.b16 %v220, %v212
    %vm253 = vcmask 261120
    %v255 = vsel %vm253, %v138, 0
    %257 = vmatpush.bf16.msra.mxu0 0
    %258 = vmatpush.bf16.msra.mxu0 0
    %259 = vmatpush.bf16.msra.mxu0 0
    %260 = vmatpush.bf16.msra.mxu0 0
    %261 = vmatpush.bf16.msra.mxu0 0
    %262 = vmatpush.bf16.msra.mxu0 0
    %263 = vmatpush.bf16.msra.mxu0 %v229
    %264 = vmatpush.bf16.msra.mxu0 %v221
    %265 = vmatmul.bf16.gmra.mxu0 %v255
    %v266 = vpop.f32.mrf.mxu0
    %v267 = vadd.f32 %v157, %v266
    %v268 = vpop.f32.mrf.mxu0
    %269 = vdwg.mxu0
    %270 = vmatpush.bf16.msra.mxu0 0
    %271 = vmatpush.bf16.msra.mxu0 0
    %272 = vmatpush.bf16.msra.mxu0 0
    %273 = vmatpush.bf16.msra.mxu0 0
    %274 = vmatpush.bf16.msra.mxu0 0
    %275 = vmatpush.bf16.msra.mxu0 0
    %276 = vmatpush.bf16.msra.mxu0 %v230
    %277 = vmatpush.bf16.msra.mxu0 %v222
    %278 = vmatmul.bf16.gmra.mxu0 %v255
    %v279 = vpop.f32.mrf.mxu0
    %v280 = vadd.f32 %v158, %v279
    %v281 = vpop.f32.mrf.mxu0
    %282 = vdwg.mxu0
    %283 = vmatpush.bf16.msra.mxu0 0
    %284 = vmatpush.bf16.msra.mxu0 0
    %285 = vmatpush.bf16.msra.mxu0 0
    %286 = vmatpush.bf16.msra.mxu0 0
    %287 = vmatpush.bf16.msra.mxu0 0
    %288 = vmatpush.bf16.msra.mxu0 0
    %289 = vmatpush.bf16.msra.mxu0 %v231
    %290 = vmatpush.bf16.msra.mxu0 %v223
    %291 = vmatmul.bf16.gmra.mxu0 %v255
    %v292 = vpop.f32.mrf.mxu0
    %v293 = vadd.f32 %v159, %v292
    %v294 = vpop.f32.mrf.mxu0
    %295 = vdwg.mxu0
    %296 = vmatpush.bf16.msra.mxu0 0
    %297 = vmatpush.bf16.msra.mxu0 0
    %298 = vmatpush.bf16.msra.mxu0 0
    %299 = vmatpush.bf16.msra.mxu0 0
    %300 = vmatpush.bf16.msra.mxu0 0
    %301 = vmatpush.bf16.msra.mxu0 0
    %302 = vmatpush.bf16.msra.mxu0 %v232
    %303 = vmatpush.bf16.msra.mxu0 %v224
    %304 = vmatmul.bf16.gmra.mxu0 %v255
    %v305 = vpop.f32.mrf.mxu0
    %v306 = vadd.f32 %v160, %v305
    %v307 = vpop.f32.mrf.mxu0
    %308 = vdwg.mxu0
    %309 = vmatpush.bf16.msra.mxu0 0
    %310 = vmatpush.bf16.msra.mxu0 0
    %311 = vmatpush.bf16.msra.mxu0 0
    %312 = vmatpush.bf16.msra.mxu0 0
    %313 = vmatpush.bf16.msra.mxu0 0
    %314 = vmatpush.bf16.msra.mxu0 0
    %315 = vmatpush.bf16.msra.mxu0 %v233
    %316 = vmatpush.bf16.msra.mxu0 %v225
    %317 = vmatmul.bf16.gmra.mxu0 %v255
    %v318 = vpop.f32.mrf.mxu0
    %v319 = vadd.f32 %v161, %v318
    %v320 = vpop.f32.mrf.mxu0
    %321 = vdwg.mxu0
    %322 = vmatpush.bf16.msra.mxu0 0
    %323 = vmatpush.bf16.msra.mxu0 0
    %324 = vmatpush.bf16.msra.mxu0 0
    %325 = vmatpush.bf16.msra.mxu0 0
    %326 = vmatpush.bf16.msra.mxu0 0
    %327 = vmatpush.bf16.msra.mxu0 0
    %328 = vmatpush.bf16.msra.mxu0 %v234
    %329 = vmatpush.bf16.msra.mxu0 %v226
    %330 = vmatmul.bf16.gmra.mxu0 %v255
    %v331 = vpop.f32.mrf.mxu0
    %v332 = vadd.f32 %v162, %v331
    %v333 = vpop.f32.mrf.mxu0
    %334 = vdwg.mxu0
    %335 = vmatpush.bf16.msra.mxu0 0
    %336 = vmatpush.bf16.msra.mxu0 0
    %337 = vmatpush.bf16.msra.mxu0 0
    %338 = vmatpush.bf16.msra.mxu0 0
    %339 = vmatpush.bf16.msra.mxu0 0
    %340 = vmatpush.bf16.msra.mxu0 0
    %341 = vmatpush.bf16.msra.mxu0 %v235
    %342 = vmatpush.bf16.msra.mxu0 %v227
    %343 = vmatmul.bf16.gmra.mxu0 %v255
    %v344 = vpop.f32.mrf.mxu0
    %v345 = vadd.f32 %v163, %v344
    %v346 = vpop.f32.mrf.mxu0
    %347 = vdwg.mxu0
    %348 = vmatpush.bf16.msra.mxu0 0
    %349 = vmatpush.bf16.msra.mxu0 0
    %350 = vmatpush.bf16.msra.mxu0 0
    %351 = vmatpush.bf16.msra.mxu0 0
    %352 = vmatpush.bf16.msra.mxu0 0
    %353 = vmatpush.bf16.msra.mxu0 0
    %354 = vmatpush.bf16.msra.mxu0 %v236
    %355 = vmatpush.bf16.msra.mxu0 %v228
    %356 = vmatmul.bf16.gmra.mxu0 %v255
    %v357 = vpop.f32.mrf.mxu0
    %v358 = vadd.f32 %v164, %v357
    %v359 = vpop.f32.mrf.mxu0
    %360 = vdwg.mxu0
    %v361 = vmax.f32 %v267, 0.0
    %v362 = vmax.f32 %v280, 0.0
    %v363 = vmax.f32 %v293, 0.0
    %v364 = vmax.f32 %v306, 0.0
    %v365 = vmax.f32 %v319, 0.0
    %v366 = vmax.f32 %v332, 0.0
    %v367 = vmax.f32 %v345, 0.0
    %v368 = vmax.f32 %v358, 0.0
    %v369 = vpack.c.bf16 %v361, %v361
    %v370 = vpack.c.bf16 %v362, %v362
    %v371 = vpack.c.bf16 %v363, %v363
    %v372 = vpack.c.bf16 %v364, %v364
    %v373 = vpack.c.bf16 %v365, %v365
    %v374 = vpack.c.bf16 %v366, %v366
    %v375 = vpack.c.bf16 %v367, %v367
    %v376 = vpack.c.bf16 %v368, %v368
    %v377 = vld [vmem:[#allocation8] sm:$0xff]
    %v378 = vld [vmem:[#allocation8 + $0x8] sm:$0xff]
    %v379 = vld [vmem:[#allocation8 + $0x10] sm:$0xff]
    %v380 = vld [vmem:[#allocation8 + $0x18] sm:$0xff]
    %v381 = vld [vmem:[#allocation8 + $0x20] sm:$0xff]
    %v382 = vld [vmem:[#allocation8 + $0x28] sm:$0xff]
    %v383 = vld [vmem:[#allocation8 + $0x30] sm:$0xff]
    %v384 = vld [vmem:[#allocation8 + $0x38] sm:$0xff]
    %v385 = vld [vmem:[#allocation8 + $0x40] sm:$0xff]
    %v386 = vld [vmem:[#allocation8 + $0x48] sm:$0xff]
    %v387 = vld [vmem:[#allocation8 + $0x50] sm:$0xff]
    %v388 = vld [vmem:[#allocation8 + $0x58] sm:$0xff]
    %v389 = vld [vmem:[#allocation8 + $0x60] sm:$0xff]
    %v390 = vld [vmem:[#allocation8 + $0x68] sm:$0xff]
    %v391 = vld [vmem:[#allocation8 + $0x70] sm:$0xff]
    %v392 = vld [vmem:[#allocation8 + $0x78] sm:$0xff]
    %v393 = vld [vmem:[#allocation8 + $0x80] sm:$0xff]
    %v394 = vld [vmem:[#allocation8 + $0x88] sm:$0xff]
    %v395 = vld [vmem:[#allocation8 + $0x90] sm:$0xff]
    %v396 = vld [vmem:[#allocation8 + $0x98] sm:$0xff]
    %v397 = vld [vmem:[#allocation8 + $0xa0] sm:$0xff]
    %v398 = vld [vmem:[#allocation8 + $0xa8] sm:$0xff]
    %v399 = vld [vmem:[#allocation8 + $0xb0] sm:$0xff]
    %v400 = vld [vmem:[#allocation8 + $0xb8] sm:$0xff]
    %v401 = vld [vmem:[#allocation8 + $0xc0] sm:$0xff]
    %v402 = vld [vmem:[#allocation8 + $0xc8] sm:$0xff]
    %v403 = vld [vmem:[#allocation8 + $0xd0] sm:$0xff]
    %v404 = vld [vmem:[#allocation8 + $0xd8] sm:$0xff]
    %v405 = vld [vmem:[#allocation8 + $0xe0] sm:$0xff]
    %v406 = vld [vmem:[#allocation8 + $0xe8] sm:$0xff]
    %v407 = vld [vmem:[#allocation8 + $0xf0] sm:$0xff]
    %v408 = vld [vmem:[#allocation8 + $0xf8] sm:$0xff]
    %v409 = vld [vmem:[#allocation8 + $0x100] sm:$0xff]
    %v410 = vld [vmem:[#allocation8 + $0x108] sm:$0xff]
    %v411 = vld [vmem:[#allocation8 + $0x110] sm:$0xff]
    %v412 = vld [vmem:[#allocation8 + $0x118] sm:$0xff]
    %v413 = vld [vmem:[#allocation8 + $0x120] sm:$0xff]
    %v414 = vld [vmem:[#allocation8 + $0x128] sm:$0xff]
    %v415 = vld [vmem:[#allocation8 + $0x130] sm:$0xff]
    %v416 = vld [vmem:[#allocation8 + $0x138] sm:$0xff]
    %v417 = vld [vmem:[#allocation8 + $0x140] sm:$0xff]
    %v418 = vld [vmem:[#allocation8 + $0x148] sm:$0xff]
    %v419 = vld [vmem:[#allocation8 + $0x150] sm:$0xff]
    %v420 = vld [vmem:[#allocation8 + $0x158] sm:$0xff]
    %v421 = vld [vmem:[#allocation8 + $0x160] sm:$0xff]
    %v422 = vld [vmem:[#allocation8 + $0x168] sm:$0xff]
    %v423 = vld [vmem:[#allocation8 + $0x170] sm:$0xff]
    %v424 = vld [vmem:[#allocation8 + $0x178] sm:$0xff]
    %v425 = vld [vmem:[#allocation8 + $0x180] sm:$0xff]
    %v426 = vld [vmem:[#allocation8 + $0x188] sm:$0xff]
    %v427 = vld [vmem:[#allocation8 + $0x190] sm:$0xff]
    %v428 = vld [vmem:[#allocation8 + $0x198] sm:$0xff]
    %v429 = vld [vmem:[#allocation8 + $0x1a0] sm:$0xff]
    %v430 = vld [vmem:[#allocation8 + $0x1a8] sm:$0xff]
    %v431 = vld [vmem:[#allocation8 + $0x1b0] sm:$0xff]
    %v432 = vld [vmem:[#allocation8 + $0x1b8] sm:$0xff]
    %v433 = vld [vmem:[#allocation8 + $0x1c0] sm:$0xff]
    %v434 = vld [vmem:[#allocation8 + $0x1c8] sm:$0xff]
    %v435 = vld [vmem:[#allocation8 + $0x1d0] sm:$0xff]
    %v436 = vld [vmem:[#allocation8 + $0x1d8] sm:$0xff]
    %v437 = vld [vmem:[#allocation8 + $0x1e0] sm:$0xff]
    %v438 = vld [vmem:[#allocation8 + $0x1e8] sm:$0xff]
    %v439 = vld [vmem:[#allocation8 + $0x1f0] sm:$0xff]
    %v440 = vld [vmem:[#allocation8 + $0x1f8] sm:$0xff]
    %v441 = vld [vmem:[#allocation8 + $0x200] sm:$0xff]
    %v442 = vld [vmem:[#allocation8 + $0x208] sm:$0xff]
    %v443 = vld [vmem:[#allocation8 + $0x210] sm:$0xff]
    %v444 = vld [vmem:[#allocation8 + $0x218] sm:$0xff]
    %v445 = vld [vmem:[#allocation8 + $0x220] sm:$0xff]
    %v446 = vld [vmem:[#allocation8 + $0x228] sm:$0xff]
    %v447 = vld [vmem:[#allocation8 + $0x230] sm:$0xff]
    %v448 = vld [vmem:[#allocation8 + $0x238] sm:$0xff]
    %v449 = vld [vmem:[#allocation8 + $0x240] sm:$0xff]
    %v450 = vld [vmem:[#allocation8 + $0x248] sm:$0xff]
    %v451 = vld [vmem:[#allocation8 + $0x250] sm:$0xff]
    %v452 = vld [vmem:[#allocation8 + $0x258] sm:$0xff]
    %v453 = vld [vmem:[#allocation8 + $0x260] sm:$0xff]
    %v454 = vld [vmem:[#allocation8 + $0x268] sm:$0xff]
    %v455 = vld [vmem:[#allocation8 + $0x270] sm:$0xff]
    %v456 = vld [vmem:[#allocation8 + $0x278] sm:$0xff]
    %v457 = vld [vmem:[#allocation8 + $0x280] sm:$0xff]
    %v458 = vld [vmem:[#allocation8 + $0x288] sm:$0xff]
    %v459 = vld [vmem:[#allocation8 + $0x290] sm:$0xff]
    %v460 = vld [vmem:[#allocation8 + $0x298] sm:$0xff]
    %v461 = vld [vmem:[#allocation8 + $0x2a0] sm:$0xff]
    %v462 = vld [vmem:[#allocation8 + $0x2a8] sm:$0xff]
    %v463 = vld [vmem:[#allocation8 + $0x2b0] sm:$0xff]
    %v464 = vld [vmem:[#allocation8 + $0x2b8] sm:$0xff]
    %v465 = vld [vmem:[#allocation8 + $0x2c0] sm:$0xff]
    %v466 = vld [vmem:[#allocation8 + $0x2c8] sm:$0xff]
    %v467 = vld [vmem:[#allocation8 + $0x2d0] sm:$0xff]
    %v468 = vld [vmem:[#allocation8 + $0x2d8] sm:$0xff]
    %v469 = vld [vmem:[#allocation8 + $0x2e0] sm:$0xff]
    %v470 = vld [vmem:[#allocation8 + $0x2e8] sm:$0xff]
    %v471 = vld [vmem:[#allocation8 + $0x2f0] sm:$0xff]
    %v472 = vld [vmem:[#allocation8 + $0x2f8] sm:$0xff]
    %v473 = vld [vmem:[#allocation8 + $0x300] sm:$0xff]
    %v474 = vld [vmem:[#allocation8 + $0x308] sm:$0xff]
    %v475 = vld [vmem:[#allocation8 + $0x310] sm:$0xff]
    %v476 = vld [vmem:[#allocation8 + $0x318] sm:$0xff]
    %v477 = vld [vmem:[#allocation8 + $0x320] sm:$0xff]
    %v478 = vld [vmem:[#allocation8 + $0x328] sm:$0xff]
    %v479 = vld [vmem:[#allocation8 + $0x330] sm:$0xff]
    %v480 = vld [vmem:[#allocation8 + $0x338] sm:$0xff]
    %v481 = vld [vmem:[#allocation8 + $0x340] sm:$0xff]
    %v482 = vld [vmem:[#allocation8 + $0x348] sm:$0xff]
    %v483 = vld [vmem:[#allocation8 + $0x350] sm:$0xff]
    %v484 = vld [vmem:[#allocation8 + $0x358] sm:$0xff]
    %v485 = vld [vmem:[#allocation8 + $0x360] sm:$0xff]
    %v486 = vld [vmem:[#allocation8 + $0x368] sm:$0xff]
    %v487 = vld [vmem:[#allocation8 + $0x370] sm:$0xff]
    %v488 = vld [vmem:[#allocation8 + $0x378] sm:$0xff]
    %v489 = vld [vmem:[#allocation8 + $0x380] sm:$0xff]
    %v490 = vld [vmem:[#allocation8 + $0x388] sm:$0xff]
    %v491 = vld [vmem:[#allocation8 + $0x390] sm:$0xff]
    %v492 = vld [vmem:[#allocation8 + $0x398] sm:$0xff]
    %v493 = vld [vmem:[#allocation8 + $0x3a0] sm:$0xff]
    %v494 = vld [vmem:[#allocation8 + $0x3a8] sm:$0xff]
    %v495 = vld [vmem:[#allocation8 + $0x3b0] sm:$0xff]
    %v496 = vld [vmem:[#allocation8 + $0x3b8] sm:$0xff]
    %v497 = vld [vmem:[#allocation8 + $0x3c0] sm:$0xff]
    %v498 = vld [vmem:[#allocation8 + $0x3c8] sm:$0xff]
    %v499 = vld [vmem:[#allocation8 + $0x3d0] sm:$0xff]
    %v500 = vld [vmem:[#allocation8 + $0x3d8] sm:$0xff]
    %v501 = vld [vmem:[#allocation8 + $0x3e0] sm:$0xff]
    %v502 = vld [vmem:[#allocation8 + $0x3e8] sm:$0xff]
    %v503 = vld [vmem:[#allocation8 + $0x3f0] sm:$0xff]
    %v504 = vld [vmem:[#allocation8 + $0x3f8] sm:$0xff]
    %v505 = vld [vmem:[#allocation8 + $0x400] sm:$0xff]
    %v506 = vld [vmem:[#allocation8 + $0x408] sm:$0xff]
    %v507 = vld [vmem:[#allocation8 + $0x410] sm:$0xff]
    %v508 = vld [vmem:[#allocation8 + $0x418] sm:$0xff]
    %v509 = vld [vmem:[#allocation8 + $0x420] sm:$0xff]
    %v510 = vld [vmem:[#allocation8 + $0x428] sm:$0xff]
    %v511 = vld [vmem:[#allocation8 + $0x430] sm:$0xff]
    %v512 = vld [vmem:[#allocation8 + $0x438] sm:$0xff]
    %v513 = vld [vmem:[#allocation8 + $0x440] sm:$0xff]
    %v514 = vld [vmem:[#allocation8 + $0x448] sm:$0xff]
    %v515 = vld [vmem:[#allocation8 + $0x450] sm:$0xff]
    %v516 = vld [vmem:[#allocation8 + $0x458] sm:$0xff]
    %v517 = vld [vmem:[#allocation8 + $0x460] sm:$0xff]
    %v518 = vld [vmem:[#allocation8 + $0x468] sm:$0xff]
    %v519 = vld [vmem:[#allocation8 + $0x470] sm:$0xff]
    %v520 = vld [vmem:[#allocation8 + $0x478] sm:$0xff]
    %v521 = vld [vmem:[#allocation8 + $0x480] sm:$0xff]
    %v522 = vld [vmem:[#allocation8 + $0x488] sm:$0xff]
    %v523 = vld [vmem:[#allocation8 + $0x490] sm:$0xff]
    %v524 = vld [vmem:[#allocation8 + $0x498] sm:$0xff]
    %v525 = vld [vmem:[#allocation8 + $0x4a0] sm:$0xff]
    %v526 = vld [vmem:[#allocation8 + $0x4a8] sm:$0xff]
    %v527 = vld [vmem:[#allocation8 + $0x4b0] sm:$0xff]
    %v528 = vld [vmem:[#allocation8 + $0x4b8] sm:$0xff]
    %v529 = vld [vmem:[#allocation8 + $0x4c0] sm:$0xff]
    %v530 = vld [vmem:[#allocation8 + $0x4c8] sm:$0xff]
    %v531 = vld [vmem:[#allocation8 + $0x4d0] sm:$0xff]
    %v532 = vld [vmem:[#allocation8 + $0x4d8] sm:$0xff]
    %v533 = vld [vmem:[#allocation8 + $0x4e0] sm:$0xff]
    %v534 = vld [vmem:[#allocation8 + $0x4e8] sm:$0xff]
    %v535 = vld [vmem:[#allocation8 + $0x4f0] sm:$0xff]
    %v536 = vld [vmem:[#allocation8 + $0x4f8] sm:$0xff]
    %v537 = vld [vmem:[#allocation8 + $0x500] sm:$0xff]
    %v538 = vld [vmem:[#allocation8 + $0x508] sm:$0xff]
    %v539 = vld [vmem:[#allocation8 + $0x510] sm:$0xff]
    %v540 = vld [vmem:[#allocation8 + $0x518] sm:$0xff]
    %v541 = vld [vmem:[#allocation8 + $0x520] sm:$0xff]
    %v542 = vld [vmem:[#allocation8 + $0x528] sm:$0xff]
    %v543 = vld [vmem:[#allocation8 + $0x530] sm:$0xff]
    %v544 = vld [vmem:[#allocation8 + $0x538] sm:$0xff]
    %v545 = vld [vmem:[#allocation8 + $0x540] sm:$0xff]
    %v546 = vld [vmem:[#allocation8 + $0x548] sm:$0xff]
    %v547 = vld [vmem:[#allocation8 + $0x550] sm:$0xff]
    %v548 = vld [vmem:[#allocation8 + $0x558] sm:$0xff]
    %v549 = vld [vmem:[#allocation8 + $0x560] sm:$0xff]
    %v550 = vld [vmem:[#allocation8 + $0x568] sm:$0xff]
    %v551 = vld [vmem:[#allocation8 + $0x570] sm:$0xff]
    %v552 = vld [vmem:[#allocation8 + $0x578] sm:$0xff]
    %v553 = vld [vmem:[#allocation8 + $0x580] sm:$0xff]
    %v554 = vld [vmem:[#allocation8 + $0x588] sm:$0xff]
    %v555 = vld [vmem:[#allocation8 + $0x590] sm:$0xff]
    %v556 = vld [vmem:[#allocation8 + $0x598] sm:$0xff]
    %v557 = vld [vmem:[#allocation8 + $0x5a0] sm:$0xff]
    %v558 = vld [vmem:[#allocation8 + $0x5a8] sm:$0xff]
    %v559 = vld [vmem:[#allocation8 + $0x5b0] sm:$0xff]
    %v560 = vld [vmem:[#allocation8 + $0x5b8] sm:$0xff]
    %v561 = vld [vmem:[#allocation8 + $0x5c0] sm:$0xff]
    %v562 = vld [vmem:[#allocation8 + $0x5c8] sm:$0xff]
    %v563 = vld [vmem:[#allocation8 + $0x5d0] sm:$0xff]
    %v564 = vld [vmem:[#allocation8 + $0x5d8] sm:$0xff]
    %v565 = vld [vmem:[#allocation8 + $0x5e0] sm:$0xff]
    %v566 = vld [vmem:[#allocation8 + $0x5e8] sm:$0xff]
    %v567 = vld [vmem:[#allocation8 + $0x5f0] sm:$0xff]
    %v568 = vld [vmem:[#allocation8 + $0x5f8] sm:$0xff]
    %v569 = vld [vmem:[#allocation8 + $0x600] sm:$0xff]
    %v570 = vld [vmem:[#allocation8 + $0x608] sm:$0xff]
    %v571 = vld [vmem:[#allocation8 + $0x610] sm:$0xff]
    %v572 = vld [vmem:[#allocation8 + $0x618] sm:$0xff]
    %v573 = vld [vmem:[#allocation8 + $0x620] sm:$0xff]
    %v574 = vld [vmem:[#allocation8 + $0x628] sm:$0xff]
    %v575 = vld [vmem:[#allocation8 + $0x630] sm:$0xff]
    %v576 = vld [vmem:[#allocation8 + $0x638] sm:$0xff]
    %v577 = vld [vmem:[#allocation8 + $0x640] sm:$0xff]
    %v578 = vld [vmem:[#allocation8 + $0x648] sm:$0xff]
    %v579 = vld [vmem:[#allocation8 + $0x650] sm:$0xff]
    %v580 = vld [vmem:[#allocation8 + $0x658] sm:$0xff]
    %v581 = vld [vmem:[#allocation8 + $0x660] sm:$0xff]
    %v582 = vld [vmem:[#allocation8 + $0x668] sm:$0xff]
    %v583 = vld [vmem:[#allocation8 + $0x670] sm:$0xff]
    %v584 = vld [vmem:[#allocation8 + $0x678] sm:$0xff]
    %v585 = vld [vmem:[#allocation8 + $0x680] sm:$0xff]
    %v586 = vld [vmem:[#allocation8 + $0x688] sm:$0xff]
    %v587 = vld [vmem:[#allocation8 + $0x690] sm:$0xff]
    %v588 = vld [vmem:[#allocation8 + $0x698] sm:$0xff]
    %v589 = vld [vmem:[#allocation8 + $0x6a0] sm:$0xff]
    %v590 = vld [vmem:[#allocation8 + $0x6a8] sm:$0xff]
    %v591 = vld [vmem:[#allocation8 + $0x6b0] sm:$0xff]
    %v592 = vld [vmem:[#allocation8 + $0x6b8] sm:$0xff]
    %v593 = vld [vmem:[#allocation8 + $0x6c0] sm:$0xff]
    %v594 = vld [vmem:[#allocation8 + $0x6c8] sm:$0xff]
    %v595 = vld [vmem:[#allocation8 + $0x6d0] sm:$0xff]
    %v596 = vld [vmem:[#allocation8 + $0x6d8] sm:$0xff]
    %v597 = vld [vmem:[#allocation8 + $0x6e0] sm:$0xff]
    %v598 = vld [vmem:[#allocation8 + $0x6e8] sm:$0xff]
    %v599 = vld [vmem:[#allocation8 + $0x6f0] sm:$0xff]
    %v600 = vld [vmem:[#allocation8 + $0x6f8] sm:$0xff]
    %v601 = vld [vmem:[#allocation8 + $0x700] sm:$0xff]
    %v602 = vld [vmem:[#allocation8 + $0x708] sm:$0xff]
    %v603 = vld [vmem:[#allocation8 + $0x710] sm:$0xff]
    %v604 = vld [vmem:[#allocation8 + $0x718] sm:$0xff]
    %v605 = vld [vmem:[#allocation8 + $0x720] sm:$0xff]
    %v606 = vld [vmem:[#allocation8 + $0x728] sm:$0xff]
    %v607 = vld [vmem:[#allocation8 + $0x730] sm:$0xff]
    %v608 = vld [vmem:[#allocation8 + $0x738] sm:$0xff]
    %v609 = vld [vmem:[#allocation8 + $0x740] sm:$0xff]
    %v610 = vld [vmem:[#allocation8 + $0x748] sm:$0xff]
    %v611 = vld [vmem:[#allocation8 + $0x750] sm:$0xff]
    %v612 = vld [vmem:[#allocation8 + $0x758] sm:$0xff]
    %v613 = vld [vmem:[#allocation8 + $0x760] sm:$0xff]
    %v614 = vld [vmem:[#allocation8 + $0x768] sm:$0xff]
    %v615 = vld [vmem:[#allocation8 + $0x770] sm:$0xff]
    %v616 = vld [vmem:[#allocation8 + $0x778] sm:$0xff]
    %v617 = vld [vmem:[#allocation8 + $0x780] sm:$0xff]
    %v618 = vld [vmem:[#allocation8 + $0x788] sm:$0xff]
    %v619 = vld [vmem:[#allocation8 + $0x790] sm:$0xff]
    %v620 = vld [vmem:[#allocation8 + $0x798] sm:$0xff]
    %v621 = vld [vmem:[#allocation8 + $0x7a0] sm:$0xff]
    %v622 = vld [vmem:[#allocation8 + $0x7a8] sm:$0xff]
    %v623 = vld [vmem:[#allocation8 + $0x7b0] sm:$0xff]
    %v624 = vld [vmem:[#allocation8 + $0x7b8] sm:$0xff]
    %v625 = vld [vmem:[#allocation8 + $0x7c0] sm:$0xff]
    %v626 = vld [vmem:[#allocation8 + $0x7c8] sm:$0xff]
    %v627 = vld [vmem:[#allocation8 + $0x7d0] sm:$0xff]
    %v628 = vld [vmem:[#allocation8 + $0x7d8] sm:$0xff]
    %v629 = vld [vmem:[#allocation8 + $0x7e0] sm:$0xff]
    %v630 = vld [vmem:[#allocation8 + $0x7e8] sm:$0xff]
    %v631 = vld [vmem:[#allocation8 + $0x7f0] sm:$0xff]
    %v632 = vld [vmem:[#allocation8 + $0x7f8] sm:$0xff]
    %v633 = vld [vmem:[#allocation10] sm:$0xf]
    %v635 = vperm.slane %v633, 0
    %v636 = vperm.slane %v633, 1
    %v637 = vperm.slane %v633, 2
    %v638 = vperm.slane %v633, 3
    %v899 = vunpack.c.l.b16 %v377
    %v900 = vunpack.c.h.b16 %v377
    %v901 = vunpack.c.l.b16 %v378
    %v902 = vunpack.c.h.b16 %v378
    %v903 = vunpack.c.l.b16 %v379
    %v904 = vunpack.c.h.b16 %v379
    %v905 = vunpack.c.l.b16 %v380
    %v906 = vunpack.c.h.b16 %v380
    %v907 = vunpack.c.l.b16 %v381
    %v908 = vunpack.c.h.b16 %v381
    %v909 = vunpack.c.l.b16 %v382
    %v910 = vunpack.c.h.b16 %v382
    %v911 = vunpack.c.l.b16 %v383
    %v912 = vunpack.c.h.b16 %v383
    %v913 = vunpack.c.l.b16 %v384
    %v914 = vunpack.c.h.b16 %v384
    %v915 = vunpack.c.l.b16 %v385
    %v916 = vunpack.c.h.b16 %v385
    %v917 = vunpack.c.l.b16 %v386
    %v918 = vunpack.c.h.b16 %v386
    %v919 = vunpack.c.l.b16 %v387
    %v920 = vunpack.c.h.b16 %v387
    %v921 = vunpack.c.l.b16 %v388
    %v922 = vunpack.c.h.b16 %v388
    %v923 = vunpack.c.l.b16 %v389
    %v924 = vunpack.c.h.b16 %v389
    %v925 = vunpack.c.l.b16 %v390
    %v926 = vunpack.c.h.b16 %v390
    %v927 = vunpack.c.l.b16 %v391
    %v928 = vunpack.c.h.b16 %v391
    %v929 = vunpack.c.l.b16 %v392
    %v930 = vunpack.c.h.b16 %v392
    %v931 = vunpack.c.l.b16 %v393
    %v932 = vunpack.c.h.b16 %v393
    %v933 = vunpack.c.l.b16 %v394
    %v934 = vunpack.c.h.b16 %v394
    %v935 = vunpack.c.l.b16 %v395
    %v936 = vunpack.c.h.b16 %v395
    %v937 = vunpack.c.l.b16 %v396
    %v938 = vunpack.c.h.b16 %v396
    %v939 = vunpack.c.l.b16 %v397
    %v940 = vunpack.c.h.b16 %v397
    %v941 = vunpack.c.l.b16 %v398
    %v942 = vunpack.c.h.b16 %v398
    %v943 = vunpack.c.l.b16 %v399
    %v944 = vunpack.c.h.b16 %v399
    %v945 = vunpack.c.l.b16 %v400
    %v946 = vunpack.c.h.b16 %v400
    %v947 = vunpack.c.l.b16 %v401
    %v948 = vunpack.c.h.b16 %v401
    %v949 = vunpack.c.l.b16 %v402
    %v950 = vunpack.c.h.b16 %v402
    %v951 = vunpack.c.l.b16 %v403
    %v952 = vunpack.c.h.b16 %v403
    %v953 = vunpack.c.l.b16 %v404
    %v954 = vunpack.c.h.b16 %v404
    %v955 = vunpack.c.l.b16 %v405
    %v956 = vunpack.c.h.b16 %v405
    %v957 = vunpack.c.l.b16 %v406
    %v958 = vunpack.c.h.b16 %v406
    %v959 = vunpack.c.l.b16 %v407
    %v960 = vunpack.c.h.b16 %v407
    %v961 = vunpack.c.l.b16 %v408
    %v962 = vunpack.c.h.b16 %v408
    %v963 = vunpack.c.l.b16 %v409
    %v964 = vunpack.c.h.b16 %v409
    %v965 = vunpack.c.l.b16 %v410
    %v966 = vunpack.c.h.b16 %v410
    %v967 = vunpack.c.l.b16 %v411
    %v968 = vunpack.c.h.b16 %v411
    %v969 = vunpack.c.l.b16 %v412
    %v970 = vunpack.c.h.b16 %v412
    %v971 = vunpack.c.l.b16 %v413
    %v972 = vunpack.c.h.b16 %v413
    %v973 = vunpack.c.l.b16 %v414
    %v974 = vunpack.c.h.b16 %v414
    %v975 = vunpack.c.l.b16 %v415
    %v976 = vunpack.c.h.b16 %v415
    %v977 = vunpack.c.l.b16 %v416
    %v978 = vunpack.c.h.b16 %v416
    %v979 = vunpack.c.l.b16 %v417
    %v980 = vunpack.c.h.b16 %v417
    %v981 = vunpack.c.l.b16 %v418
    %v982 = vunpack.c.h.b16 %v418
    %v983 = vunpack.c.l.b16 %v419
    %v984 = vunpack.c.h.b16 %v419
    %v985 = vunpack.c.l.b16 %v420
    %v986 = vunpack.c.h.b16 %v420
    %v987 = vunpack.c.l.b16 %v421
    %v988 = vunpack.c.h.b16 %v421
    %v989 = vunpack.c.l.b16 %v422
    %v990 = vunpack.c.h.b16 %v422
    %v991 = vunpack.c.l.b16 %v423
    %v992 = vunpack.c.h.b16 %v423
    %v993 = vunpack.c.l.b16 %v424
    %v994 = vunpack.c.h.b16 %v424
    %v995 = vunpack.c.l.b16 %v425
    %v996 = vunpack.c.h.b16 %v425
    %v997 = vunpack.c.l.b16 %v426
    %v998 = vunpack.c.h.b16 %v426
    %v999 = vunpack.c.l.b16 %v427
    %v1000 = vunpack.c.h.b16 %v427
    %v1001 = vunpack.c.l.b16 %v428
    %v1002 = vunpack.c.h.b16 %v428
    %v1003 = vunpack.c.l.b16 %v429
    %v1004 = vunpack.c.h.b16 %v429
    %v1005 = vunpack.c.l.b16 %v430
    %v1006 = vunpack.c.h.b16 %v430
    %v1007 = vunpack.c.l.b16 %v431
    %v1008 = vunpack.c.h.b16 %v431
    %v1009 = vunpack.c.l.b16 %v432
    %v1010 = vunpack.c.h.b16 %v432
    %v1011 = vunpack.c.l.b16 %v433
    %v1012 = vunpack.c.h.b16 %v433
    %v1013 = vunpack.c.l.b16 %v434
    %v1014 = vunpack.c.h.b16 %v434
    %v1015 = vunpack.c.l.b16 %v435
    %v1016 = vunpack.c.h.b16 %v435
    %v1017 = vunpack.c.l.b16 %v436
    %v1018 = vunpack.c.h.b16 %v436
    %v1019 = vunpack.c.l.b16 %v437
    %v1020 = vunpack.c.h.b16 %v437
    %v1021 = vunpack.c.l.b16 %v438
    %v1022 = vunpack.c.h.b16 %v438
    %v1023 = vunpack.c.l.b16 %v439
    %v1024 = vunpack.c.h.b16 %v439
    %v1025 = vunpack.c.l.b16 %v440
    %v1026 = vunpack.c.h.b16 %v440
    %v1027 = vunpack.c.l.b16 %v441
    %v1028 = vunpack.c.h.b16 %v441
    %v1029 = vunpack.c.l.b16 %v442
    %v1030 = vunpack.c.h.b16 %v442
    %v1031 = vunpack.c.l.b16 %v443
    %v1032 = vunpack.c.h.b16 %v443
    %v1033 = vunpack.c.l.b16 %v444
    %v1034 = vunpack.c.h.b16 %v444
    %v1035 = vunpack.c.l.b16 %v445
    %v1036 = vunpack.c.h.b16 %v445
    %v1037 = vunpack.c.l.b16 %v446
    %v1038 = vunpack.c.h.b16 %v446
    %v1039 = vunpack.c.l.b16 %v447
    %v1040 = vunpack.c.h.b16 %v447
    %v1041 = vunpack.c.l.b16 %v448
    %v1042 = vunpack.c.h.b16 %v448
    %v1043 = vunpack.c.l.b16 %v449
    %v1044 = vunpack.c.h.b16 %v449
    %v1045 = vunpack.c.l.b16 %v450
    %v1046 = vunpack.c.h.b16 %v450
    %v1047 = vunpack.c.l.b16 %v451
    %v1048 = vunpack.c.h.b16 %v451
    %v1049 = vunpack.c.l.b16 %v452
    %v1050 = vunpack.c.h.b16 %v452
    %v1051 = vunpack.c.l.b16 %v453
    %v1052 = vunpack.c.h.b16 %v453
    %v1053 = vunpack.c.l.b16 %v454
    %v1054 = vunpack.c.h.b16 %v454
    %v1055 = vunpack.c.l.b16 %v455
    %v1056 = vunpack.c.h.b16 %v455
    %v1057 = vunpack.c.l.b16 %v456
    %v1058 = vunpack.c.h.b16 %v456
    %v1059 = vunpack.c.l.b16 %v457
    %v1060 = vunpack.c.h.b16 %v457
    %v1061 = vunpack.c.l.b16 %v458
    %v1062 = vunpack.c.h.b16 %v458
    %v1063 = vunpack.c.l.b16 %v459
    %v1064 = vunpack.c.h.b16 %v459
    %v1065 = vunpack.c.l.b16 %v460
    %v1066 = vunpack.c.h.b16 %v460
    %v1067 = vunpack.c.l.b16 %v461
    %v1068 = vunpack.c.h.b16 %v461
    %v1069 = vunpack.c.l.b16 %v462
    %v1070 = vunpack.c.h.b16 %v462
    %v1071 = vunpack.c.l.b16 %v463
    %v1072 = vunpack.c.h.b16 %v463
    %v1073 = vunpack.c.l.b16 %v464
    %v1074 = vunpack.c.h.b16 %v464
    %v1075 = vunpack.c.l.b16 %v465
    %v1076 = vunpack.c.h.b16 %v465
    %v1077 = vunpack.c.l.b16 %v466
    %v1078 = vunpack.c.h.b16 %v466
    %v1079 = vunpack.c.l.b16 %v467
    %v1080 = vunpack.c.h.b16 %v467
    %v1081 = vunpack.c.l.b16 %v468
    %v1082 = vunpack.c.h.b16 %v468
    %v1083 = vunpack.c.l.b16 %v469
    %v1084 = vunpack.c.h.b16 %v469
    %v1085 = vunpack.c.l.b16 %v470
    %v1086 = vunpack.c.h.b16 %v470
    %v1087 = vunpack.c.l.b16 %v471
    %v1088 = vunpack.c.h.b16 %v471
    %v1089 = vunpack.c.l.b16 %v472
    %v1090 = vunpack.c.h.b16 %v472
    %v1091 = vunpack.c.l.b16 %v473
    %v1092 = vunpack.c.h.b16 %v473
    %v1093 = vunpack.c.l.b16 %v474
    %v1094 = vunpack.c.h.b16 %v474
    %v1095 = vunpack.c.l.b16 %v475
    %v1096 = vunpack.c.h.b16 %v475
    %v1097 = vunpack.c.l.b16 %v476
    %v1098 = vunpack.c.h.b16 %v476
    %v1099 = vunpack.c.l.b16 %v477
    %v1100 = vunpack.c.h.b16 %v477
    %v1101 = vunpack.c.l.b16 %v478
    %v1102 = vunpack.c.h.b16 %v478
    %v1103 = vunpack.c.l.b16 %v479
    %v1104 = vunpack.c.h.b16 %v479
    %v1105 = vunpack.c.l.b16 %v480
    %v1106 = vunpack.c.h.b16 %v480
    %v1107 = vunpack.c.l.b16 %v481
    %v1108 = vunpack.c.h.b16 %v481
    %v1109 = vunpack.c.l.b16 %v482
    %v1110 = vunpack.c.h.b16 %v482
    %v1111 = vunpack.c.l.b16 %v483
    %v1112 = vunpack.c.h.b16 %v483
    %v1113 = vunpack.c.l.b16 %v484
    %v1114 = vunpack.c.h.b16 %v484
    %v1115 = vunpack.c.l.b16 %v485
    %v1116 = vunpack.c.h.b16 %v485
    %v1117 = vunpack.c.l.b16 %v486
    %v1118 = vunpack.c.h.b16 %v486
    %v1119 = vunpack.c.l.b16 %v487
    %v1120 = vunpack.c.h.b16 %v487
    %v1121 = vunpack.c.l.b16 %v488
    %v1122 = vunpack.c.h.b16 %v488
    %v1123 = vunpack.c.l.b16 %v489
    %v1124 = vunpack.c.h.b16 %v489
    %v1125 = vunpack.c.l.b16 %v490
    %v1126 = vunpack.c.h.b16 %v490
    %v1127 = vunpack.c.l.b16 %v491
    %v1128 = vunpack.c.h.b16 %v491
    %v1129 = vunpack.c.l.b16 %v492
    %v1130 = vunpack.c.h.b16 %v492
    %v1131 = vunpack.c.l.b16 %v493
    %v1132 = vunpack.c.h.b16 %v493
    %v1133 = vunpack.c.l.b16 %v494
    %v1134 = vunpack.c.h.b16 %v494
    %v1135 = vunpack.c.l.b16 %v495
    %v1136 = vunpack.c.h.b16 %v495
    %v1137 = vunpack.c.l.b16 %v496
    %v1138 = vunpack.c.h.b16 %v496
    %v1139 = vunpack.c.l.b16 %v497
    %v1140 = vunpack.c.h.b16 %v497
    %v1141 = vunpack.c.l.b16 %v498
    %v1142 = vunpack.c.h.b16 %v498
    %v1143 = vunpack.c.l.b16 %v499
    %v1144 = vunpack.c.h.b16 %v499
    %v1145 = vunpack.c.l.b16 %v500
    %v1146 = vunpack.c.h.b16 %v500
    %v1147 = vunpack.c.l.b16 %v501
    %v1148 = vunpack.c.h.b16 %v501
    %v1149 = vunpack.c.l.b16 %v502
    %v1150 = vunpack.c.h.b16 %v502
    %v1151 = vunpack.c.l.b16 %v503
    %v1152 = vunpack.c.h.b16 %v503
    %v1153 = vunpack.c.l.b16 %v504
    %v1154 = vunpack.c.h.b16 %v504
    %v1155 = vunpack.c.l.b16 %v505
    %v1156 = vunpack.c.h.b16 %v505
    %v1157 = vunpack.c.l.b16 %v506
    %v1158 = vunpack.c.h.b16 %v506
    %v1159 = vunpack.c.l.b16 %v507
    %v1160 = vunpack.c.h.b16 %v507
    %v1161 = vunpack.c.l.b16 %v508
    %v1162 = vunpack.c.h.b16 %v508
    %v1163 = vunpack.c.l.b16 %v509
    %v1164 = vunpack.c.h.b16 %v509
    %v1165 = vunpack.c.l.b16 %v510
    %v1166 = vunpack.c.h.b16 %v510
    %v1167 = vunpack.c.l.b16 %v511
    %v1168 = vunpack.c.h.b16 %v511
    %v1169 = vunpack.c.l.b16 %v512
    %v1170 = vunpack.c.h.b16 %v512
    %v1171 = vunpack.c.l.b16 %v513
    %v1172 = vunpack.c.h.b16 %v513
    %v1173 = vunpack.c.l.b16 %v514
    %v1174 = vunpack.c.h.b16 %v514
    %v1175 = vunpack.c.l.b16 %v515
    %v1176 = vunpack.c.h.b16 %v515
    %v1177 = vunpack.c.l.b16 %v516
    %v1178 = vunpack.c.h.b16 %v516
    %v1179 = vunpack.c.l.b16 %v517
    %v1180 = vunpack.c.h.b16 %v517
    %v1181 = vunpack.c.l.b16 %v518
    %v1182 = vunpack.c.h.b16 %v518
    %v1183 = vunpack.c.l.b16 %v519
    %v1184 = vunpack.c.h.b16 %v519
    %v1185 = vunpack.c.l.b16 %v520
    %v1186 = vunpack.c.h.b16 %v520
    %v1187 = vunpack.c.l.b16 %v521
    %v1188 = vunpack.c.h.b16 %v521
    %v1189 = vunpack.c.l.b16 %v522
    %v1190 = vunpack.c.h.b16 %v522
    %v1191 = vunpack.c.l.b16 %v523
    %v1192 = vunpack.c.h.b16 %v523
    %v1193 = vunpack.c.l.b16 %v524
    %v1194 = vunpack.c.h.b16 %v524
    %v1195 = vunpack.c.l.b16 %v525
    %v1196 = vunpack.c.h.b16 %v525
    %v1197 = vunpack.c.l.b16 %v526
    %v1198 = vunpack.c.h.b16 %v526
    %v1199 = vunpack.c.l.b16 %v527
    %v1200 = vunpack.c.h.b16 %v527
    %v1201 = vunpack.c.l.b16 %v528
    %v1202 = vunpack.c.h.b16 %v528
    %v1203 = vunpack.c.l.b16 %v529
    %v1204 = vunpack.c.h.b16 %v529
    %v1205 = vunpack.c.l.b16 %v530
    %v1206 = vunpack.c.h.b16 %v530
    %v1207 = vunpack.c.l.b16 %v531
    %v1208 = vunpack.c.h.b16 %v531
    %v1209 = vunpack.c.l.b16 %v532
    %v1210 = vunpack.c.h.b16 %v532
    %v1211 = vunpack.c.l.b16 %v533
    %v1212 = vunpack.c.h.b16 %v533
    %v1213 = vunpack.c.l.b16 %v534
    %v1214 = vunpack.c.h.b16 %v534
    %v1215 = vunpack.c.l.b16 %v535
    %v1216 = vunpack.c.h.b16 %v535
    %v1217 = vunpack.c.l.b16 %v536
    %v1218 = vunpack.c.h.b16 %v536
    %v1219 = vunpack.c.l.b16 %v537
    %v1220 = vunpack.c.h.b16 %v537
    %v1221 = vunpack.c.l.b16 %v538
    %v1222 = vunpack.c.h.b16 %v538
    %v1223 = vunpack.c.l.b16 %v539
    %v1224 = vunpack.c.h.b16 %v539
    %v1225 = vunpack.c.l.b16 %v540
    %v1226 = vunpack.c.h.b16 %v540
    %v1227 = vunpack.c.l.b16 %v541
    %v1228 = vunpack.c.h.b16 %v541
    %v1229 = vunpack.c.l.b16 %v542
    %v1230 = vunpack.c.h.b16 %v542
    %v1231 = vunpack.c.l.b16 %v543
    %v1232 = vunpack.c.h.b16 %v543
    %v1233 = vunpack.c.l.b16 %v544
    %v1234 = vunpack.c.h.b16 %v544
    %v1235 = vunpack.c.l.b16 %v545
    %v1236 = vunpack.c.h.b16 %v545
    %v1237 = vunpack.c.l.b16 %v546
    %v1238 = vunpack.c.h.b16 %v546
    %v1239 = vunpack.c.l.b16 %v547
    %v1240 = vunpack.c.h.b16 %v547
    %v1241 = vunpack.c.l.b16 %v548
    %v1242 = vunpack.c.h.b16 %v548
    %v1243 = vunpack.c.l.b16 %v549
    %v1244 = vunpack.c.h.b16 %v549
    %v1245 = vunpack.c.l.b16 %v550
    %v1246 = vunpack.c.h.b16 %v550
    %v1247 = vunpack.c.l.b16 %v551
    %v1248 = vunpack.c.h.b16 %v551
    %v1249 = vunpack.c.l.b16 %v552
    %v1250 = vunpack.c.h.b16 %v552
    %v1251 = vunpack.c.l.b16 %v553
    %v1252 = vunpack.c.h.b16 %v553
    %v1253 = vunpack.c.l.b16 %v554
    %v1254 = vunpack.c.h.b16 %v554
    %v1255 = vunpack.c.l.b16 %v555
    %v1256 = vunpack.c.h.b16 %v555
    %v1257 = vunpack.c.l.b16 %v556
    %v1258 = vunpack.c.h.b16 %v556
    %v1259 = vunpack.c.l.b16 %v557
    %v1260 = vunpack.c.h.b16 %v557
    %v1261 = vunpack.c.l.b16 %v558
    %v1262 = vunpack.c.h.b16 %v558
    %v1263 = vunpack.c.l.b16 %v559
    %v1264 = vunpack.c.h.b16 %v559
    %v1265 = vunpack.c.l.b16 %v560
    %v1266 = vunpack.c.h.b16 %v560
    %v1267 = vunpack.c.l.b16 %v561
    %v1268 = vunpack.c.h.b16 %v561
    %v1269 = vunpack.c.l.b16 %v562
    %v1270 = vunpack.c.h.b16 %v562
    %v1271 = vunpack.c.l.b16 %v563
    %v1272 = vunpack.c.h.b16 %v563
    %v1273 = vunpack.c.l.b16 %v564
    %v1274 = vunpack.c.h.b16 %v564
    %v1275 = vunpack.c.l.b16 %v565
    %v1276 = vunpack.c.h.b16 %v565
    %v1277 = vunpack.c.l.b16 %v566
    %v1278 = vunpack.c.h.b16 %v566
    %v1279 = vunpack.c.l.b16 %v567
    %v1280 = vunpack.c.h.b16 %v567
    %v1281 = vunpack.c.l.b16 %v568
    %v1282 = vunpack.c.h.b16 %v568
    %v1283 = vunpack.c.l.b16 %v569
    %v1284 = vunpack.c.h.b16 %v569
    %v1285 = vunpack.c.l.b16 %v570
    %v1286 = vunpack.c.h.b16 %v570
    %v1287 = vunpack.c.l.b16 %v571
    %v1288 = vunpack.c.h.b16 %v571
    %v1289 = vunpack.c.l.b16 %v572
    %v1290 = vunpack.c.h.b16 %v572
    %v1291 = vunpack.c.l.b16 %v573
    %v1292 = vunpack.c.h.b16 %v573
    %v1293 = vunpack.c.l.b16 %v574
    %v1294 = vunpack.c.h.b16 %v574
    %v1295 = vunpack.c.l.b16 %v575
    %v1296 = vunpack.c.h.b16 %v575
    %v1297 = vunpack.c.l.b16 %v576
    %v1298 = vunpack.c.h.b16 %v576
    %v1299 = vunpack.c.l.b16 %v577
    %v1300 = vunpack.c.h.b16 %v577
    %v1301 = vunpack.c.l.b16 %v578
    %v1302 = vunpack.c.h.b16 %v578
    %v1303 = vunpack.c.l.b16 %v579
    %v1304 = vunpack.c.h.b16 %v579
    %v1305 = vunpack.c.l.b16 %v580
    %v1306 = vunpack.c.h.b16 %v580
    %v1307 = vunpack.c.l.b16 %v581
    %v1308 = vunpack.c.h.b16 %v581
    %v1309 = vunpack.c.l.b16 %v582
    %v1310 = vunpack.c.h.b16 %v582
    %v1311 = vunpack.c.l.b16 %v583
    %v1312 = vunpack.c.h.b16 %v583
    %v1313 = vunpack.c.l.b16 %v584
    %v1314 = vunpack.c.h.b16 %v584
    %v1315 = vunpack.c.l.b16 %v585
    %v1316 = vunpack.c.h.b16 %v585
    %v1317 = vunpack.c.l.b16 %v586
    %v1318 = vunpack.c.h.b16 %v586
    %v1319 = vunpack.c.l.b16 %v587
    %v1320 = vunpack.c.h.b16 %v587
    %v1321 = vunpack.c.l.b16 %v588
    %v1322 = vunpack.c.h.b16 %v588
    %v1323 = vunpack.c.l.b16 %v589
    %v1324 = vunpack.c.h.b16 %v589
    %v1325 = vunpack.c.l.b16 %v590
    %v1326 = vunpack.c.h.b16 %v590
    %v1327 = vunpack.c.l.b16 %v591
    %v1328 = vunpack.c.h.b16 %v591
    %v1329 = vunpack.c.l.b16 %v592
    %v1330 = vunpack.c.h.b16 %v592
    %v1331 = vunpack.c.l.b16 %v593
    %v1332 = vunpack.c.h.b16 %v593
    %v1333 = vunpack.c.l.b16 %v594
    %v1334 = vunpack.c.h.b16 %v594
    %v1335 = vunpack.c.l.b16 %v595
    %v1336 = vunpack.c.h.b16 %v595
    %v1337 = vunpack.c.l.b16 %v596
    %v1338 = vunpack.c.h.b16 %v596
    %v1339 = vunpack.c.l.b16 %v597
    %v1340 = vunpack.c.h.b16 %v597
    %v1341 = vunpack.c.l.b16 %v598
    %v1342 = vunpack.c.h.b16 %v598
    %v1343 = vunpack.c.l.b16 %v599
    %v1344 = vunpack.c.h.b16 %v599
    %v1345 = vunpack.c.l.b16 %v600
    %v1346 = vunpack.c.h.b16 %v600
    %v1347 = vunpack.c.l.b16 %v601
    %v1348 = vunpack.c.h.b16 %v601
    %v1349 = vunpack.c.l.b16 %v602
    %v1350 = vunpack.c.h.b16 %v602
    %v1351 = vunpack.c.l.b16 %v603
    %v1352 = vunpack.c.h.b16 %v603
    %v1353 = vunpack.c.l.b16 %v604
    %v1354 = vunpack.c.h.b16 %v604
    %v1355 = vunpack.c.l.b16 %v605
    %v1356 = vunpack.c.h.b16 %v605
    %v1357 = vunpack.c.l.b16 %v606
    %v1358 = vunpack.c.h.b16 %v606
    %v1359 = vunpack.c.l.b16 %v607
    %v1360 = vunpack.c.h.b16 %v607
    %v1361 = vunpack.c.l.b16 %v608
    %v1362 = vunpack.c.h.b16 %v608
    %v1363 = vunpack.c.l.b16 %v609
    %v1364 = vunpack.c.h.b16 %v609
    %v1365 = vunpack.c.l.b16 %v610
    %v1366 = vunpack.c.h.b16 %v610
    %v1367 = vunpack.c.l.b16 %v611
    %v1368 = vunpack.c.h.b16 %v611
    %v1369 = vunpack.c.l.b16 %v612
    %v1370 = vunpack.c.h.b16 %v612
    %v1371 = vunpack.c.l.b16 %v613
    %v1372 = vunpack.c.h.b16 %v613
    %v1373 = vunpack.c.l.b16 %v614
    %v1374 = vunpack.c.h.b16 %v614
    %v1375 = vunpack.c.l.b16 %v615
    %v1376 = vunpack.c.h.b16 %v615
    %v1377 = vunpack.c.l.b16 %v616
    %v1378 = vunpack.c.h.b16 %v616
    %v1379 = vunpack.c.l.b16 %v617
    %v1380 = vunpack.c.h.b16 %v617
    %v1381 = vunpack.c.l.b16 %v618
    %v1382 = vunpack.c.h.b16 %v618
    %v1383 = vunpack.c.l.b16 %v619
    %v1384 = vunpack.c.h.b16 %v619
    %v1385 = vunpack.c.l.b16 %v620
    %v1386 = vunpack.c.h.b16 %v620
    %v1387 = vunpack.c.l.b16 %v621
    %v1388 = vunpack.c.h.b16 %v621
    %v1389 = vunpack.c.l.b16 %v622
    %v1390 = vunpack.c.h.b16 %v622
    %v1391 = vunpack.c.l.b16 %v623
    %v1392 = vunpack.c.h.b16 %v623
    %v1393 = vunpack.c.l.b16 %v624
    %v1394 = vunpack.c.h.b16 %v624
    %v1395 = vunpack.c.l.b16 %v625
    %v1396 = vunpack.c.h.b16 %v625
    %v1397 = vunpack.c.l.b16 %v626
    %v1398 = vunpack.c.h.b16 %v626
    %v1399 = vunpack.c.l.b16 %v627
    %v1400 = vunpack.c.h.b16 %v627
    %v1401 = vunpack.c.l.b16 %v628
    %v1402 = vunpack.c.h.b16 %v628
    %v1403 = vunpack.c.l.b16 %v629
    %v1404 = vunpack.c.h.b16 %v629
    %v1405 = vunpack.c.l.b16 %v630
    %v1406 = vunpack.c.h.b16 %v630
    %v1407 = vunpack.c.l.b16 %v631
    %v1408 = vunpack.c.h.b16 %v631
    %v1409 = vunpack.c.l.b16 %v632
    %v1410 = vunpack.c.h.b16 %v632
    %v1411 = vpack.c.b16 %v903, %v899
    %v1412 = vpack.c.b16 %v904, %v900
    %v1413 = vpack.c.b16 %v905, %v901
    %v1414 = vpack.c.b16 %v906, %v902
    %v1415 = vpack.c.b16 %v911, %v907
    %v1416 = vpack.c.b16 %v912, %v908
    %v1417 = vpack.c.b16 %v913, %v909
    %v1418 = vpack.c.b16 %v914, %v910
    %v1419 = vpack.c.b16 %v919, %v915
    %v1420 = vpack.c.b16 %v920, %v916
    %v1421 = vpack.c.b16 %v921, %v917
    %v1422 = vpack.c.b16 %v922, %v918
    %v1423 = vpack.c.b16 %v927, %v923
    %v1424 = vpack.c.b16 %v928, %v924
    %v1425 = vpack.c.b16 %v929, %v925
    %v1426 = vpack.c.b16 %v930, %v926
    %v1427 = vpack.c.b16 %v935, %v931
    %v1428 = vpack.c.b16 %v936, %v932
    %v1429 = vpack.c.b16 %v937, %v933
    %v1430 = vpack.c.b16 %v938, %v934
    %v1431 = vpack.c.b16 %v943, %v939
    %v1432 = vpack.c.b16 %v944, %v940
    %v1433 = vpack.c.b16 %v945, %v941
    %v1434 = vpack.c.b16 %v946, %v942
    %v1435 = vpack.c.b16 %v951, %v947
    %v1436 = vpack.c.b16 %v952, %v948
    %v1437 = vpack.c.b16 %v953, %v949
    %v1438 = vpack.c.b16 %v954, %v950
    %v1439 = vpack.c.b16 %v959, %v955
    %v1440 = vpack.c.b16 %v960, %v956
    %v1441 = vpack.c.b16 %v961, %v957
    %v1442 = vpack.c.b16 %v962, %v958
    %v1443 = vpack.c.b16 %v967, %v963
    %v1444 = vpack.c.b16 %v968, %v964
    %v1445 = vpack.c.b16 %v969, %v965
    %v1446 = vpack.c.b16 %v970, %v966
    %v1447 = vpack.c.b16 %v975, %v971
    %v1448 = vpack.c.b16 %v976, %v972
    %v1449 = vpack.c.b16 %v977, %v973
    %v1450 = vpack.c.b16 %v978, %v974
    %v1451 = vpack.c.b16 %v983, %v979
    %v1452 = vpack.c.b16 %v984, %v980
    %v1453 = vpack.c.b16 %v985, %v981
    %v1454 = vpack.c.b16 %v986, %v982
    %v1455 = vpack.c.b16 %v991, %v987
    %v1456 = vpack.c.b16 %v992, %v988
    %v1457 = vpack.c.b16 %v993, %v989
    %v1458 = vpack.c.b16 %v994, %v990
    %v1459 = vpack.c.b16 %v999, %v995
    %v1460 = vpack.c.b16 %v1000, %v996
    %v1461 = vpack.c.b16 %v1001, %v997
    %v1462 = vpack.c.b16 %v1002, %v998
    %v1463 = vpack.c.b16 %v1007, %v1003
    %v1464 = vpack.c.b16 %v1008, %v1004
    %v1465 = vpack.c.b16 %v1009, %v1005
    %v1466 = vpack.c.b16 %v1010, %v1006
    %v1467 = vpack.c.b16 %v1015, %v1011
    %v1468 = vpack.c.b16 %v1016, %v1012
    %v1469 = vpack.c.b16 %v1017, %v1013
    %v1470 = vpack.c.b16 %v1018, %v1014
    %v1471 = vpack.c.b16 %v1023, %v1019
    %v1472 = vpack.c.b16 %v1024, %v1020
    %v1473 = vpack.c.b16 %v1025, %v1021
    %v1474 = vpack.c.b16 %v1026, %v1022
    %v1475 = vpack.c.b16 %v1031, %v1027
    %v1476 = vpack.c.b16 %v1032, %v1028
    %v1477 = vpack.c.b16 %v1033, %v1029
    %v1478 = vpack.c.b16 %v1034, %v1030
    %v1479 = vpack.c.b16 %v1039, %v1035
    %v1480 = vpack.c.b16 %v1040, %v1036
    %v1481 = vpack.c.b16 %v1041, %v1037
    %v1482 = vpack.c.b16 %v1042, %v1038
    %v1483 = vpack.c.b16 %v1047, %v1043
    %v1484 = vpack.c.b16 %v1048, %v1044
    %v1485 = vpack.c.b16 %v1049, %v1045
    %v1486 = vpack.c.b16 %v1050, %v1046
    %v1487 = vpack.c.b16 %v1055, %v1051
    %v1488 = vpack.c.b16 %v1056, %v1052
    %v1489 = vpack.c.b16 %v1057, %v1053
    %v1490 = vpack.c.b16 %v1058, %v1054
    %v1491 = vpack.c.b16 %v1063, %v1059
    %v1492 = vpack.c.b16 %v1064, %v1060
    %v1493 = vpack.c.b16 %v1065, %v1061
    %v1494 = vpack.c.b16 %v1066, %v1062
    %v1495 = vpack.c.b16 %v1071, %v1067
    %v1496 = vpack.c.b16 %v1072, %v1068
    %v1497 = vpack.c.b16 %v1073, %v1069
    %v1498 = vpack.c.b16 %v1074, %v1070
    %v1499 = vpack.c.b16 %v1079, %v1075
    %v1500 = vpack.c.b16 %v1080, %v1076
    %v1501 = vpack.c.b16 %v1081, %v1077
    %v1502 = vpack.c.b16 %v1082, %v1078
    %v1503 = vpack.c.b16 %v1087, %v1083
    %v1504 = vpack.c.b16 %v1088, %v1084
    %v1505 = vpack.c.b16 %v1089, %v1085
    %v1506 = vpack.c.b16 %v1090, %v1086
    %v1507 = vpack.c.b16 %v1095, %v1091
    %v1508 = vpack.c.b16 %v1096, %v1092
    %v1509 = vpack.c.b16 %v1097, %v1093
    %v1510 = vpack.c.b16 %v1098, %v1094
    %v1511 = vpack.c.b16 %v1103, %v1099
    %v1512 = vpack.c.b16 %v1104, %v1100
    %v1513 = vpack.c.b16 %v1105, %v1101
    %v1514 = vpack.c.b16 %v1106, %v1102
    %v1515 = vpack.c.b16 %v1111, %v1107
    %v1516 = vpack.c.b16 %v1112, %v1108
    %v1517 = vpack.c.b16 %v1113, %v1109
    %v1518 = vpack.c.b16 %v1114, %v1110
    %v1519 = vpack.c.b16 %v1119, %v1115
    %v1520 = vpack.c.b16 %v1120, %v1116
    %v1521 = vpack.c.b16 %v1121, %v1117
    %v1522 = vpack.c.b16 %v1122, %v1118
    %v1523 = vpack.c.b16 %v1127, %v1123
    %v1524 = vpack.c.b16 %v1128, %v1124
    %v1525 = vpack.c.b16 %v1129, %v1125
    %v1526 = vpack.c.b16 %v1130, %v1126
    %v1527 = vpack.c.b16 %v1135, %v1131
    %v1528 = vpack.c.b16 %v1136, %v1132
    %v1529 = vpack.c.b16 %v1137, %v1133
    %v1530 = vpack.c.b16 %v1138, %v1134
    %v1531 = vpack.c.b16 %v1143, %v1139
    %v1532 = vpack.c.b16 %v1144, %v1140
    %v1533 = vpack.c.b16 %v1145, %v1141
    %v1534 = vpack.c.b16 %v1146, %v1142
    %v1535 = vpack.c.b16 %v1151, %v1147
    %v1536 = vpack.c.b16 %v1152, %v1148
    %v1537 = vpack.c.b16 %v1153, %v1149
    %v1538 = vpack.c.b16 %v1154, %v1150
    %v1539 = vpack.c.b16 %v1159, %v1155
    %v1540 = vpack.c.b16 %v1160, %v1156
    %v1541 = vpack.c.b16 %v1161, %v1157
    %v1542 = vpack.c.b16 %v1162, %v1158
    %v1543 = vpack.c.b16 %v1167, %v1163
    %v1544 = vpack.c.b16 %v1168, %v1164
    %v1545 = vpack.c.b16 %v1169, %v1165
    %v1546 = vpack.c.b16 %v1170, %v1166
    %v1547 = vpack.c.b16 %v1175, %v1171
    %v1548 = vpack.c.b16 %v1176, %v1172
    %v1549 = vpack.c.b16 %v1177, %v1173
    %v1550 = vpack.c.b16 %v1178, %v1174
    %v1551 = vpack.c.b16 %v1183, %v1179
    %v1552 = vpack.c.b16 %v1184, %v1180
    %v1553 = vpack.c.b16 %v1185, %v1181
    %v1554 = vpack.c.b16 %v1186, %v1182
    %v1555 = vpack.c.b16 %v1191, %v1187
    %v1556 = vpack.c.b16 %v1192, %v1188
    %v1557 = vpack.c.b16 %v1193, %v1189
    %v1558 = vpack.c.b16 %v1194, %v1190
    %v1559 = vpack.c.b16 %v1199, %v1195
    %v1560 = vpack.c.b16 %v1200, %v1196
    %v1561 = vpack.c.b16 %v1201, %v1197
    %v1562 = vpack.c.b16 %v1202, %v1198
    %v1563 = vpack.c.b16 %v1207, %v1203
    %v1564 = vpack.c.b16 %v1208, %v1204
    %v1565 = vpack.c.b16 %v1209, %v1205
    %v1566 = vpack.c.b16 %v1210, %v1206
    %v1567 = vpack.c.b16 %v1215, %v1211
    %v1568 = vpack.c.b16 %v1216, %v1212
    %v1569 = vpack.c.b16 %v1217, %v1213
    %v1570 = vpack.c.b16 %v1218, %v1214
    %v1571 = vpack.c.b16 %v1223, %v1219
    %v1572 = vpack.c.b16 %v1224, %v1220
    %v1573 = vpack.c.b16 %v1225, %v1221
    %v1574 = vpack.c.b16 %v1226, %v1222
    %v1575 = vpack.c.b16 %v1231, %v1227
    %v1576 = vpack.c.b16 %v1232, %v1228
    %v1577 = vpack.c.b16 %v1233, %v1229
    %v1578 = vpack.c.b16 %v1234, %v1230
    %v1579 = vpack.c.b16 %v1239, %v1235
    %v1580 = vpack.c.b16 %v1240, %v1236
    %v1581 = vpack.c.b16 %v1241, %v1237
    %v1582 = vpack.c.b16 %v1242, %v1238
    %v1583 = vpack.c.b16 %v1247, %v1243
    %v1584 = vpack.c.b16 %v1248, %v1244
    %v1585 = vpack.c.b16 %v1249, %v1245
    %v1586 = vpack.c.b16 %v1250, %v1246
    %v1587 = vpack.c.b16 %v1255, %v1251
    %v1588 = vpack.c.b16 %v1256, %v1252
    %v1589 = vpack.c.b16 %v1257, %v1253
    %v1590 = vpack.c.b16 %v1258, %v1254
    %v1591 = vpack.c.b16 %v1263, %v1259
    %v1592 = vpack.c.b16 %v1264, %v1260
    %v1593 = vpack.c.b16 %v1265, %v1261
    %v1594 = vpack.c.b16 %v1266, %v1262
    %v1595 = vpack.c.b16 %v1271, %v1267
    %v1596 = vpack.c.b16 %v1272, %v1268
    %v1597 = vpack.c.b16 %v1273, %v1269
    %v1598 = vpack.c.b16 %v1274, %v1270
    %v1599 = vpack.c.b16 %v1279, %v1275
    %v1600 = vpack.c.b16 %v1280, %v1276
    %v1601 = vpack.c.b16 %v1281, %v1277
    %v1602 = vpack.c.b16 %v1282, %v1278
    %v1603 = vpack.c.b16 %v1287, %v1283
    %v1604 = vpack.c.b16 %v1288, %v1284
    %v1605 = vpack.c.b16 %v1289, %v1285
    %v1606 = vpack.c.b16 %v1290, %v1286
    %v1607 = vpack.c.b16 %v1295, %v1291
    %v1608 = vpack.c.b16 %v1296, %v1292
    %v1609 = vpack.c.b16 %v1297, %v1293
    %v1610 = vpack.c.b16 %v1298, %v1294
    %v1611 = vpack.c.b16 %v1303, %v1299
    %v1612 = vpack.c.b16 %v1304, %v1300
    %v1613 = vpack.c.b16 %v1305, %v1301
    %v1614 = vpack.c.b16 %v1306, %v1302
    %v1615 = vpack.c.b16 %v1311, %v1307
    %v1616 = vpack.c.b16 %v1312, %v1308
    %v1617 = vpack.c.b16 %v1313, %v1309
    %v1618 = vpack.c.b16 %v1314, %v1310
    %v1619 = vpack.c.b16 %v1319, %v1315
    %v1620 = vpack.c.b16 %v1320, %v1316
    %v1621 = vpack.c.b16 %v1321, %v1317
    %v1622 = vpack.c.b16 %v1322, %v1318
    %v1623 = vpack.c.b16 %v1327, %v1323
    %v1624 = vpack.c.b16 %v1328, %v1324
    %v1625 = vpack.c.b16 %v1329, %v1325
    %v1626 = vpack.c.b16 %v1330, %v1326
    %v1627 = vpack.c.b16 %v1335, %v1331
    %v1628 = vpack.c.b16 %v1336, %v1332
    %v1629 = vpack.c.b16 %v1337, %v1333
    %v1630 = vpack.c.b16 %v1338, %v1334
    %v1631 = vpack.c.b16 %v1343, %v1339
    %v1632 = vpack.c.b16 %v1344, %v1340
    %v1633 = vpack.c.b16 %v1345, %v1341
    %v1634 = vpack.c.b16 %v1346, %v1342
    %v1635 = vpack.c.b16 %v1351, %v1347
    %v1636 = vpack.c.b16 %v1352, %v1348
    %v1637 = vpack.c.b16 %v1353, %v1349
    %v1638 = vpack.c.b16 %v1354, %v1350
    %v1639 = vpack.c.b16 %v1359, %v1355
    %v1640 = vpack.c.b16 %v1360, %v1356
    %v1641 = vpack.c.b16 %v1361, %v1357
    %v1642 = vpack.c.b16 %v1362, %v1358
    %v1643 = vpack.c.b16 %v1367, %v1363
    %v1644 = vpack.c.b16 %v1368, %v1364
    %v1645 = vpack.c.b16 %v1369, %v1365
    %v1646 = vpack.c.b16 %v1370, %v1366
    %v1647 = vpack.c.b16 %v1375, %v1371
    %v1648 = vpack.c.b16 %v1376, %v1372
    %v1649 = vpack.c.b16 %v1377, %v1373
    %v1650 = vpack.c.b16 %v1378, %v1374
    %v1651 = vpack.c.b16 %v1383, %v1379
    %v1652 = vpack.c.b16 %v1384, %v1380
    %v1653 = vpack.c.b16 %v1385, %v1381
    %v1654 = vpack.c.b16 %v1386, %v1382
    %v1655 = vpack.c.b16 %v1391, %v1387
    %v1656 = vpack.c.b16 %v1392, %v1388
    %v1657 = vpack.c.b16 %v1393, %v1389
    %v1658 = vpack.c.b16 %v1394, %v1390
    %v1659 = vpack.c.b16 %v1399, %v1395
    %v1660 = vpack.c.b16 %v1400, %v1396
    %v1661 = vpack.c.b16 %v1401, %v1397
    %v1662 = vpack.c.b16 %v1402, %v1398
    %v1663 = vpack.c.b16 %v1407, %v1403
    %v1664 = vpack.c.b16 %v1408, %v1404
    %v1665 = vpack.c.b16 %v1409, %v1405
    %v1666 = vpack.c.b16 %v1410, %v1406
    %1923 = vmatpush.bf16.msra.mxu0 %v1439
    %1924 = vmatpush.bf16.msra.mxu0 %v1435
    %1925 = vmatpush.bf16.msra.mxu0 %v1431
    %1926 = vmatpush.bf16.msra.mxu0 %v1427
    %1927 = vmatpush.bf16.msra.mxu0 %v1423
    %1928 = vmatpush.bf16.msra.mxu0 %v1419
    %1929 = vmatpush.bf16.msra.mxu0 %v1415
    %1930 = vmatpush.bf16.msra.mxu0 %v1411
    %1931 = vmatmul.bf16.gmra.mxu0 %v369
    %v1932 = vpop.f32.mrf.mxu0
    %v1933 = vadd.f32 %v635, %v1932
    %v1934 = vpop.f32.mrf.mxu0
    %1935 = vdwg.mxu0
    %1936 = vmatpush.bf16.msra.mxu0 %v1471
    %1937 = vmatpush.bf16.msra.mxu0 %v1467
    %1938 = vmatpush.bf16.msra.mxu0 %v1463
    %1939 = vmatpush.bf16.msra.mxu0 %v1459
    %1940 = vmatpush.bf16.msra.mxu0 %v1455
    %1941 = vmatpush.bf16.msra.mxu0 %v1451
    %1942 = vmatpush.bf16.msra.mxu0 %v1447
    %1943 = vmatpush.bf16.msra.mxu0 %v1443
    %1944 = vmatmul.bf16.gmra.mxu0 %v370
    %v1945 = vpop.f32.mrf.mxu0
    %v1946 = vadd.f32 %v1933, %v1945
    %v1947 = vpop.f32.mrf.mxu0
    %1948 = vdwg.mxu0
    %1949 = vmatpush.bf16.msra.mxu0 %v1503
    %1950 = vmatpush.bf16.msra.mxu0 %v1499
    %1951 = vmatpush.bf16.msra.mxu0 %v1495
    %1952 = vmatpush.bf16.msra.mxu0 %v1491
    %1953 = vmatpush.bf16.msra.mxu0 %v1487
    %1954 = vmatpush.bf16.msra.mxu0 %v1483
    %1955 = vmatpush.bf16.msra.mxu0 %v1479
    %1956 = vmatpush.bf16.msra.mxu0 %v1475
    %1957 = vmatmul.bf16.gmra.mxu0 %v371
    %v1958 = vpop.f32.mrf.mxu0
    %v1959 = vadd.f32 %v1946, %v1958
    %v1960 = vpop.f32.mrf.mxu0
    %1961 = vdwg.mxu0
    %1962 = vmatpush.bf16.msra.mxu0 %v1535
    %1963 = vmatpush.bf16.msra.mxu0 %v1531
    %1964 = vmatpush.bf16.msra.mxu0 %v1527
    %1965 = vmatpush.bf16.msra.mxu0 %v1523
    %1966 = vmatpush.bf16.msra.mxu0 %v1519
    %1967 = vmatpush.bf16.msra.mxu0 %v1515
    %1968 = vmatpush.bf16.msra.mxu0 %v1511
    %1969 = vmatpush.bf16.msra.mxu0 %v1507
    %1970 = vmatmul.bf16.gmra.mxu0 %v372
    %v1971 = vpop.f32.mrf.mxu0
    %v1972 = vadd.f32 %v1959, %v1971
    %v1973 = vpop.f32.mrf.mxu0
    %1974 = vdwg.mxu0
    %1975 = vmatpush.bf16.msra.mxu0 %v1567
    %1976 = vmatpush.bf16.msra.mxu0 %v1563
    %1977 = vmatpush.bf16.msra.mxu0 %v1559
    %1978 = vmatpush.bf16.msra.mxu0 %v1555
    %1979 = vmatpush.bf16.msra.mxu0 %v1551
    %1980 = vmatpush.bf16.msra.mxu0 %v1547
    %1981 = vmatpush.bf16.msra.mxu0 %v1543
    %1982 = vmatpush.bf16.msra.mxu0 %v1539
    %1983 = vmatmul.bf16.gmra.mxu0 %v373
    %v1984 = vpop.f32.mrf.mxu0
    %v1985 = vadd.f32 %v1972, %v1984
    %v1986 = vpop.f32.mrf.mxu0
    %1987 = vdwg.mxu0
    %1988 = vmatpush.bf16.msra.mxu0 %v1599
    %1989 = vmatpush.bf16.msra.mxu0 %v1595
    %1990 = vmatpush.bf16.msra.mxu0 %v1591
    %1991 = vmatpush.bf16.msra.mxu0 %v1587
    %1992 = vmatpush.bf16.msra.mxu0 %v1583
    %1993 = vmatpush.bf16.msra.mxu0 %v1579
    %1994 = vmatpush.bf16.msra.mxu0 %v1575
    %1995 = vmatpush.bf16.msra.mxu0 %v1571
    %1996 = vmatmul.bf16.gmra.mxu0 %v374
    %v1997 = vpop.f32.mrf.mxu0
    %v1998 = vadd.f32 %v1985, %v1997
    %v1999 = vpop.f32.mrf.mxu0
    %2000 = vdwg.mxu0
    %2001 = vmatpush.bf16.msra.mxu0 %v1631
    %2002 = vmatpush.bf16.msra.mxu0 %v1627
    %2003 = vmatpush.bf16.msra.mxu0 %v1623
    %2004 = vmatpush.bf16.msra.mxu0 %v1619
    %2005 = vmatpush.bf16.msra.mxu0 %v1615
    %2006 = vmatpush.bf16.msra.mxu0 %v1611
    %2007 = vmatpush.bf16.msra.mxu0 %v1607
    %2008 = vmatpush.bf16.msra.mxu0 %v1603
    %2009 = vmatmul.bf16.gmra.mxu0 %v375
    %v2010 = vpop.f32.mrf.mxu0
    %v2011 = vadd.f32 %v1998, %v2010
    %v2012 = vpop.f32.mrf.mxu0
    %2013 = vdwg.mxu0
    %2014 = vmatpush.bf16.msra.mxu0 %v1663
    %2015 = vmatpush.bf16.msra.mxu0 %v1659
    %2016 = vmatpush.bf16.msra.mxu0 %v1655
    %2017 = vmatpush.bf16.msra.mxu0 %v1651
    %2018 = vmatpush.bf16.msra.mxu0 %v1647
    %2019 = vmatpush.bf16.msra.mxu0 %v1643
    %2020 = vmatpush.bf16.msra.mxu0 %v1639
    %2021 = vmatpush.bf16.msra.mxu0 %v1635
    %2022 = vmatmul.bf16.gmra.mxu0 %v376
    %v2023 = vpop.f32.mrf.mxu0
    %v2024 = vadd.f32 %v2011, %v2023
    %v2025 = vpop.f32.mrf.mxu0
    %2026 = vdwg.mxu0
    %2027 = vmatpush.bf16.msra.mxu0 %v1440
    %2028 = vmatpush.bf16.msra.mxu0 %v1436
    %2029 = vmatpush.bf16.msra.mxu0 %v1432
    %2030 = vmatpush.bf16.msra.mxu0 %v1428
    %2031 = vmatpush.bf16.msra.mxu0 %v1424
    %2032 = vmatpush.bf16.msra.mxu0 %v1420
    %2033 = vmatpush.bf16.msra.mxu0 %v1416
    %2034 = vmatpush.bf16.msra.mxu0 %v1412
    %2035 = vmatmul.bf16.gmra.mxu0 %v369
    %v2036 = vpop.f32.mrf.mxu0
    %v2037 = vadd.f32 %v636, %v2036
    %v2038 = vpop.f32.mrf.mxu0
    %2039 = vdwg.mxu0
    %2040 = vmatpush.bf16.msra.mxu0 %v1472
    %2041 = vmatpush.bf16.msra.mxu0 %v1468
    %2042 = vmatpush.bf16.msra.mxu0 %v1464
    %2043 = vmatpush.bf16.msra.mxu0 %v1460
    %2044 = vmatpush.bf16.msra.mxu0 %v1456
    %2045 = vmatpush.bf16.msra.mxu0 %v1452
    %2046 = vmatpush.bf16.msra.mxu0 %v1448
    %2047 = vmatpush.bf16.msra.mxu0 %v1444
    %2048 = vmatmul.bf16.gmra.mxu0 %v370
    %v2049 = vpop.f32.mrf.mxu0
    %v2050 = vadd.f32 %v2037, %v2049
    %v2051 = vpop.f32.mrf.mxu0
    %2052 = vdwg.mxu0
    %2053 = vmatpush.bf16.msra.mxu0 %v1504
    %2054 = vmatpush.bf16.msra.mxu0 %v1500
    %2055 = vmatpush.bf16.msra.mxu0 %v1496
    %2056 = vmatpush.bf16.msra.mxu0 %v1492
    %2057 = vmatpush.bf16.msra.mxu0 %v1488
    %2058 = vmatpush.bf16.msra.mxu0 %v1484
    %2059 = vmatpush.bf16.msra.mxu0 %v1480
    %2060 = vmatpush.bf16.msra.mxu0 %v1476
    %2061 = vmatmul.bf16.gmra.mxu0 %v371
    %v2062 = vpop.f32.mrf.mxu0
    %v2063 = vadd.f32 %v2050, %v2062
    %v2064 = vpop.f32.mrf.mxu0
    %2065 = vdwg.mxu0
    %2066 = vmatpush.bf16.msra.mxu0 %v1536
    %2067 = vmatpush.bf16.msra.mxu0 %v1532
    %2068 = vmatpush.bf16.msra.mxu0 %v1528
    %2069 = vmatpush.bf16.msra.mxu0 %v1524
    %2070 = vmatpush.bf16.msra.mxu0 %v1520
    %2071 = vmatpush.bf16.msra.mxu0 %v1516
    %2072 = vmatpush.bf16.msra.mxu0 %v1512
    %2073 = vmatpush.bf16.msra.mxu0 %v1508
    %2074 = vmatmul.bf16.gmra.mxu0 %v372
    %v2075 = vpop.f32.mrf.mxu0
    %v2076 = vadd.f32 %v2063, %v2075
    %v2077 = vpop.f32.mrf.mxu0
    %2078 = vdwg.mxu0
    %2079 = vmatpush.bf16.msra.mxu0 %v1568
    %2080 = vmatpush.bf16.msra.mxu0 %v1564
    %2081 = vmatpush.bf16.msra.mxu0 %v1560
    %2082 = vmatpush.bf16.msra.mxu0 %v1556
    %2083 = vmatpush.bf16.msra.mxu0 %v1552
    %2084 = vmatpush.bf16.msra.mxu0 %v1548
    %2085 = vmatpush.bf16.msra.mxu0 %v1544
    %2086 = vmatpush.bf16.msra.mxu0 %v1540
    %2087 = vmatmul.bf16.gmra.mxu0 %v373
    %v2088 = vpop.f32.mrf.mxu0
    %v2089 = vadd.f32 %v2076, %v2088
    %v2090 = vpop.f32.mrf.mxu0
    %2091 = vdwg.mxu0
    %2092 = vmatpush.bf16.msra.mxu0 %v1600
    %2093 = vmatpush.bf16.msra.mxu0 %v1596
    %2094 = vmatpush.bf16.msra.mxu0 %v1592
    %2095 = vmatpush.bf16.msra.mxu0 %v1588
    %2096 = vmatpush.bf16.msra.mxu0 %v1584
    %2097 = vmatpush.bf16.msra.mxu0 %v1580
    %2098 = vmatpush.bf16.msra.mxu0 %v1576
    %2099 = vmatpush.bf16.msra.mxu0 %v1572
    %2100 = vmatmul.bf16.gmra.mxu0 %v374
    %v2101 = vpop.f32.mrf.mxu0
    %v2102 = vadd.f32 %v2089, %v2101
    %v2103 = vpop.f32.mrf.mxu0
    %2104 = vdwg.mxu0
    %2105 = vmatpush.bf16.msra.mxu0 %v1632
    %2106 = vmatpush.bf16.msra.mxu0 %v1628
    %2107 = vmatpush.bf16.msra.mxu0 %v1624
    %2108 = vmatpush.bf16.msra.mxu0 %v1620
    %2109 = vmatpush.bf16.msra.mxu0 %v1616
    %2110 = vmatpush.bf16.msra.mxu0 %v1612
    %2111 = vmatpush.bf16.msra.mxu0 %v1608
    %2112 = vmatpush.bf16.msra.mxu0 %v1604
    %2113 = vmatmul.bf16.gmra.mxu0 %v375
    %v2114 = vpop.f32.mrf.mxu0
    %v2115 = vadd.f32 %v2102, %v2114
    %v2116 = vpop.f32.mrf.mxu0
    %2117 = vdwg.mxu0
    %2118 = vmatpush.bf16.msra.mxu0 %v1664
    %2119 = vmatpush.bf16.msra.mxu0 %v1660
    %2120 = vmatpush.bf16.msra.mxu0 %v1656
    %2121 = vmatpush.bf16.msra.mxu0 %v1652
    %2122 = vmatpush.bf16.msra.mxu0 %v1648
    %2123 = vmatpush.bf16.msra.mxu0 %v1644
    %2124 = vmatpush.bf16.msra.mxu0 %v1640
    %2125 = vmatpush.bf16.msra.mxu0 %v1636
    %2126 = vmatmul.bf16.gmra.mxu0 %v376
    %v2127 = vpop.f32.mrf.mxu0
    %v2128 = vadd.f32 %v2115, %v2127
    %v2129 = vpop.f32.mrf.mxu0
    %2130 = vdwg.mxu0
    %2131 = vmatpush.bf16.msra.mxu0 %v1441
    %2132 = vmatpush.bf16.msra.mxu0 %v1437
    %2133 = vmatpush.bf16.msra.mxu0 %v1433
    %2134 = vmatpush.bf16.msra.mxu0 %v1429
    %2135 = vmatpush.bf16.msra.mxu0 %v1425
    %2136 = vmatpush.bf16.msra.mxu0 %v1421
    %2137 = vmatpush.bf16.msra.mxu0 %v1417
    %2138 = vmatpush.bf16.msra.mxu0 %v1413
    %2139 = vmatmul.bf16.gmra.mxu0 %v369
    %v2140 = vpop.f32.mrf.mxu0
    %v2141 = vadd.f32 %v637, %v2140
    %v2142 = vpop.f32.mrf.mxu0
    %2143 = vdwg.mxu0
    %2144 = vmatpush.bf16.msra.mxu0 %v1473
    %2145 = vmatpush.bf16.msra.mxu0 %v1469
    %2146 = vmatpush.bf16.msra.mxu0 %v1465
    %2147 = vmatpush.bf16.msra.mxu0 %v1461
    %2148 = vmatpush.bf16.msra.mxu0 %v1457
    %2149 = vmatpush.bf16.msra.mxu0 %v1453
    %2150 = vmatpush.bf16.msra.mxu0 %v1449
    %2151 = vmatpush.bf16.msra.mxu0 %v1445
    %2152 = vmatmul.bf16.gmra.mxu0 %v370
    %v2153 = vpop.f32.mrf.mxu0
    %v2154 = vadd.f32 %v2141, %v2153
    %v2155 = vpop.f32.mrf.mxu0
    %2156 = vdwg.mxu0
    %2157 = vmatpush.bf16.msra.mxu0 %v1505
    %2158 = vmatpush.bf16.msra.mxu0 %v1501
    %2159 = vmatpush.bf16.msra.mxu0 %v1497
    %2160 = vmatpush.bf16.msra.mxu0 %v1493
    %2161 = vmatpush.bf16.msra.mxu0 %v1489
    %2162 = vmatpush.bf16.msra.mxu0 %v1485
    %2163 = vmatpush.bf16.msra.mxu0 %v1481
    %2164 = vmatpush.bf16.msra.mxu0 %v1477
    %2165 = vmatmul.bf16.gmra.mxu0 %v371
    %v2166 = vpop.f32.mrf.mxu0
    %v2167 = vadd.f32 %v2154, %v2166
    %v2168 = vpop.f32.mrf.mxu0
    %2169 = vdwg.mxu0
    %2170 = vmatpush.bf16.msra.mxu0 %v1537
    %2171 = vmatpush.bf16.msra.mxu0 %v1533
    %2172 = vmatpush.bf16.msra.mxu0 %v1529
    %2173 = vmatpush.bf16.msra.mxu0 %v1525
    %2174 = vmatpush.bf16.msra.mxu0 %v1521
    %2175 = vmatpush.bf16.msra.mxu0 %v1517
    %2176 = vmatpush.bf16.msra.mxu0 %v1513
    %2177 = vmatpush.bf16.msra.mxu0 %v1509
    %2178 = vmatmul.bf16.gmra.mxu0 %v372
    %v2179 = vpop.f32.mrf.mxu0
    %v2180 = vadd.f32 %v2167, %v2179
    %v2181 = vpop.f32.mrf.mxu0
    %2182 = vdwg.mxu0
    %2183 = vmatpush.bf16.msra.mxu0 %v1569
    %2184 = vmatpush.bf16.msra.mxu0 %v1565
    %2185 = vmatpush.bf16.msra.mxu0 %v1561
    %2186 = vmatpush.bf16.msra.mxu0 %v1557
    %2187 = vmatpush.bf16.msra.mxu0 %v1553
    %2188 = vmatpush.bf16.msra.mxu0 %v1549
    %2189 = vmatpush.bf16.msra.mxu0 %v1545
    %2190 = vmatpush.bf16.msra.mxu0 %v1541
    %2191 = vmatmul.bf16.gmra.mxu0 %v373
    %v2192 = vpop.f32.mrf.mxu0
    %v2193 = vadd.f32 %v2180, %v2192
    %v2194 = vpop.f32.mrf.mxu0
    %2195 = vdwg.mxu0
    %2196 = vmatpush.bf16.msra.mxu0 %v1601
    %2197 = vmatpush.bf16.msra.mxu0 %v1597
    %2198 = vmatpush.bf16.msra.mxu0 %v1593
    %2199 = vmatpush.bf16.msra.mxu0 %v1589
    %2200 = vmatpush.bf16.msra.mxu0 %v1585
    %2201 = vmatpush.bf16.msra.mxu0 %v1581
    %2202 = vmatpush.bf16.msra.mxu0 %v1577
    %2203 = vmatpush.bf16.msra.mxu0 %v1573
    %2204 = vmatmul.bf16.gmra.mxu0 %v374
    %v2205 = vpop.f32.mrf.mxu0
    %v2206 = vadd.f32 %v2193, %v2205
    %v2207 = vpop.f32.mrf.mxu0
    %2208 = vdwg.mxu0
    %2209 = vmatpush.bf16.msra.mxu0 %v1633
    %2210 = vmatpush.bf16.msra.mxu0 %v1629
    %2211 = vmatpush.bf16.msra.mxu0 %v1625
    %2212 = vmatpush.bf16.msra.mxu0 %v1621
    %2213 = vmatpush.bf16.msra.mxu0 %v1617
    %2214 = vmatpush.bf16.msra.mxu0 %v1613
    %2215 = vmatpush.bf16.msra.mxu0 %v1609
    %2216 = vmatpush.bf16.msra.mxu0 %v1605
    %2217 = vmatmul.bf16.gmra.mxu0 %v375
    %v2218 = vpop.f32.mrf.mxu0
    %v2219 = vadd.f32 %v2206, %v2218
    %v2220 = vpop.f32.mrf.mxu0
    %2221 = vdwg.mxu0
    %2222 = vmatpush.bf16.msra.mxu0 %v1665
    %2223 = vmatpush.bf16.msra.mxu0 %v1661
    %2224 = vmatpush.bf16.msra.mxu0 %v1657
    %2225 = vmatpush.bf16.msra.mxu0 %v1653
    %2226 = vmatpush.bf16.msra.mxu0 %v1649
    %2227 = vmatpush.bf16.msra.mxu0 %v1645
    %2228 = vmatpush.bf16.msra.mxu0 %v1641
    %2229 = vmatpush.bf16.msra.mxu0 %v1637
    %2230 = vmatmul.bf16.gmra.mxu0 %v376
    %v2231 = vpop.f32.mrf.mxu0
    %v2232 = vadd.f32 %v2219, %v2231
    %v2233 = vpop.f32.mrf.mxu0
    %2234 = vdwg.mxu0
    %2235 = vmatpush.bf16.msra.mxu0 %v1442
    %2236 = vmatpush.bf16.msra.mxu0 %v1438
    %2237 = vmatpush.bf16.msra.mxu0 %v1434
    %2238 = vmatpush.bf16.msra.mxu0 %v1430
    %2239 = vmatpush.bf16.msra.mxu0 %v1426
    %2240 = vmatpush.bf16.msra.mxu0 %v1422
    %2241 = vmatpush.bf16.msra.mxu0 %v1418
    %2242 = vmatpush.bf16.msra.mxu0 %v1414
    %2243 = vmatmul.bf16.gmra.mxu0 %v369
    %v2244 = vpop.f32.mrf.mxu0
    %v2245 = vadd.f32 %v638, %v2244
    %v2246 = vpop.f32.mrf.mxu0
    %2247 = vdwg.mxu0
    %2248 = vmatpush.bf16.msra.mxu0 %v1474
    %2249 = vmatpush.bf16.msra.mxu0 %v1470
    %2250 = vmatpush.bf16.msra.mxu0 %v1466
    %2251 = vmatpush.bf16.msra.mxu0 %v1462
    %2252 = vmatpush.bf16.msra.mxu0 %v1458
    %2253 = vmatpush.bf16.msra.mxu0 %v1454
    %2254 = vmatpush.bf16.msra.mxu0 %v1450
    %2255 = vmatpush.bf16.msra.mxu0 %v1446
    %2256 = vmatmul.bf16.gmra.mxu0 %v370
    %v2257 = vpop.f32.mrf.mxu0
    %v2258 = vadd.f32 %v2245, %v2257
    %v2259 = vpop.f32.mrf.mxu0
    %2260 = vdwg.mxu0
    %2261 = vmatpush.bf16.msra.mxu0 %v1506
    %2262 = vmatpush.bf16.msra.mxu0 %v1502
    %2263 = vmatpush.bf16.msra.mxu0 %v1498
    %2264 = vmatpush.bf16.msra.mxu0 %v1494
    %2265 = vmatpush.bf16.msra.mxu0 %v1490
    %2266 = vmatpush.bf16.msra.mxu0 %v1486
    %2267 = vmatpush.bf16.msra.mxu0 %v1482
    %2268 = vmatpush.bf16.msra.mxu0 %v1478
    %2269 = vmatmul.bf16.gmra.mxu0 %v371
    %v2270 = vpop.f32.mrf.mxu0
    %v2271 = vadd.f32 %v2258, %v2270
    %v2272 = vpop.f32.mrf.mxu0
    %2273 = vdwg.mxu0
    %2274 = vmatpush.bf16.msra.mxu0 %v1538
    %2275 = vmatpush.bf16.msra.mxu0 %v1534
    %2276 = vmatpush.bf16.msra.mxu0 %v1530
    %2277 = vmatpush.bf16.msra.mxu0 %v1526
    %2278 = vmatpush.bf16.msra.mxu0 %v1522
    %2279 = vmatpush.bf16.msra.mxu0 %v1518
    %2280 = vmatpush.bf16.msra.mxu0 %v1514
    %2281 = vmatpush.bf16.msra.mxu0 %v1510
    %2282 = vmatmul.bf16.gmra.mxu0 %v372
    %v2283 = vpop.f32.mrf.mxu0
    %v2284 = vadd.f32 %v2271, %v2283
    %v2285 = vpop.f32.mrf.mxu0
    %2286 = vdwg.mxu0
    %2287 = vmatpush.bf16.msra.mxu0 %v1570
    %2288 = vmatpush.bf16.msra.mxu0 %v1566
    %2289 = vmatpush.bf16.msra.mxu0 %v1562
    %2290 = vmatpush.bf16.msra.mxu0 %v1558
    %2291 = vmatpush.bf16.msra.mxu0 %v1554
    %2292 = vmatpush.bf16.msra.mxu0 %v1550
    %2293 = vmatpush.bf16.msra.mxu0 %v1546
    %2294 = vmatpush.bf16.msra.mxu0 %v1542
    %2295 = vmatmul.bf16.gmra.mxu0 %v373
    %v2296 = vpop.f32.mrf.mxu0
    %v2297 = vadd.f32 %v2284, %v2296
    %v2298 = vpop.f32.mrf.mxu0
    %2299 = vdwg.mxu0
    %2300 = vmatpush.bf16.msra.mxu0 %v1602
    %2301 = vmatpush.bf16.msra.mxu0 %v1598
    %2302 = vmatpush.bf16.msra.mxu0 %v1594
    %2303 = vmatpush.bf16.msra.mxu0 %v1590
    %2304 = vmatpush.bf16.msra.mxu0 %v1586
    %2305 = vmatpush.bf16.msra.mxu0 %v1582
    %2306 = vmatpush.bf16.msra.mxu0 %v1578
    %2307 = vmatpush.bf16.msra.mxu0 %v1574
    %2308 = vmatmul.bf16.gmra.mxu0 %v374
    %v2309 = vpop.f32.mrf.mxu0
    %v2310 = vadd.f32 %v2297, %v2309
    %v2311 = vpop.f32.mrf.mxu0
    %2312 = vdwg.mxu0
    %2313 = vmatpush.bf16.msra.mxu0 %v1634
    %2314 = vmatpush.bf16.msra.mxu0 %v1630
    %2315 = vmatpush.bf16.msra.mxu0 %v1626
    %2316 = vmatpush.bf16.msra.mxu0 %v1622
    %2317 = vmatpush.bf16.msra.mxu0 %v1618
    %2318 = vmatpush.bf16.msra.mxu0 %v1614
    %2319 = vmatpush.bf16.msra.mxu0 %v1610
    %2320 = vmatpush.bf16.msra.mxu0 %v1606
    %2321 = vmatmul.bf16.gmra.mxu0 %v375
    %v2322 = vpop.f32.mrf.mxu0
    %v2323 = vadd.f32 %v2310, %v2322
    %v2324 = vpop.f32.mrf.mxu0
    %2325 = vdwg.mxu0
    %2326 = vmatpush.bf16.msra.mxu0 %v1666
    %2327 = vmatpush.bf16.msra.mxu0 %v1662
    %2328 = vmatpush.bf16.msra.mxu0 %v1658
    %2329 = vmatpush.bf16.msra.mxu0 %v1654
    %2330 = vmatpush.bf16.msra.mxu0 %v1650
    %2331 = vmatpush.bf16.msra.mxu0 %v1646
    %2332 = vmatpush.bf16.msra.mxu0 %v1642
    %2333 = vmatpush.bf16.msra.mxu0 %v1638
    %2334 = vmatmul.bf16.gmra.mxu0 %v376
    %v2335 = vpop.f32.mrf.mxu0
    %v2336 = vadd.f32 %v2323, %v2335
    %v2337 = vpop.f32.mrf.mxu0
    %2338 = vdwg.mxu0
    %v2339 = vmax.f32 %v2024, 0.0
    %v2340 = vmax.f32 %v2128, 0.0
    %v2341 = vmax.f32 %v2232, 0.0
    %v2342 = vmax.f32 %v2336, 0.0
    %v2343 = vpack.c.bf16 %v2339, %v2339
    %v2344 = vpack.c.bf16 %v2340, %v2340
    %v2345 = vpack.c.bf16 %v2341, %v2341
    %v2346 = vpack.c.bf16 %v2342, %v2342
    %v2347 = vld [vmem:[#allocation11] sm:$0xff]
    %v2348 = vld [vmem:[#allocation11 + $0x8] sm:$0xff]
    %v2349 = vld [vmem:[#allocation11 + $0x10] sm:$0xff]
    %v2350 = vld [vmem:[#allocation11 + $0x18] sm:$0xff]
    %v2351 = vld [vmem:[#allocation11 + $0x20] sm:$0xff]
    %v2352 = vld [vmem:[#allocation11 + $0x28] sm:$0xff]
    %v2353 = vld [vmem:[#allocation11 + $0x30] sm:$0xff]
    %v2354 = vld [vmem:[#allocation11 + $0x38] sm:$0xff]
    %v2355 = vld [vmem:[#allocation11 + $0x40] sm:$0xff]
    %v2356 = vld [vmem:[#allocation11 + $0x48] sm:$0xff]
    %v2357 = vld [vmem:[#allocation11 + $0x50] sm:$0xff]
    %v2358 = vld [vmem:[#allocation11 + $0x58] sm:$0xff]
    %v2359 = vld [vmem:[#allocation11 + $0x60] sm:$0xff]
    %v2360 = vld [vmem:[#allocation11 + $0x68] sm:$0xff]
    %v2361 = vld [vmem:[#allocation11 + $0x70] sm:$0xff]
    %v2362 = vld [vmem:[#allocation11 + $0x78] sm:$0xff]
    %v2363 = vld [vmem:[#allocation11 + $0x80] sm:$0xff]
    %v2364 = vld [vmem:[#allocation11 + $0x88] sm:$0xff]
    %v2365 = vld [vmem:[#allocation11 + $0x90] sm:$0xff]
    %v2366 = vld [vmem:[#allocation11 + $0x98] sm:$0xff]
    %v2367 = vld [vmem:[#allocation11 + $0xa0] sm:$0xff]
    %v2368 = vld [vmem:[#allocation11 + $0xa8] sm:$0xff]
    %v2369 = vld [vmem:[#allocation11 + $0xb0] sm:$0xff]
    %v2370 = vld [vmem:[#allocation11 + $0xb8] sm:$0xff]
    %v2371 = vld [vmem:[#allocation11 + $0xc0] sm:$0xff]
    %v2372 = vld [vmem:[#allocation11 + $0xc8] sm:$0xff]
    %v2373 = vld [vmem:[#allocation11 + $0xd0] sm:$0xff]
    %v2374 = vld [vmem:[#allocation11 + $0xd8] sm:$0xff]
    %v2375 = vld [vmem:[#allocation11 + $0xe0] sm:$0xff]
    %v2376 = vld [vmem:[#allocation11 + $0xe8] sm:$0xff]
    %v2377 = vld [vmem:[#allocation11 + $0xf0] sm:$0xff]
    %v2378 = vld [vmem:[#allocation11 + $0xf8] sm:$0xff]
    %v2379 = vld [vmem:[#allocation11 + $0x100] sm:$0xff]
    %v2380 = vld [vmem:[#allocation11 + $0x108] sm:$0xff]
    %v2381 = vld [vmem:[#allocation11 + $0x110] sm:$0xff]
    %v2382 = vld [vmem:[#allocation11 + $0x118] sm:$0xff]
    %v2383 = vld [vmem:[#allocation11 + $0x120] sm:$0xff]
    %v2384 = vld [vmem:[#allocation11 + $0x128] sm:$0xff]
    %v2385 = vld [vmem:[#allocation11 + $0x130] sm:$0xff]
    %v2386 = vld [vmem:[#allocation11 + $0x138] sm:$0xff]
    %v2387 = vld [vmem:[#allocation11 + $0x140] sm:$0xff]
    %v2388 = vld [vmem:[#allocation11 + $0x148] sm:$0xff]
    %v2389 = vld [vmem:[#allocation11 + $0x150] sm:$0xff]
    %v2390 = vld [vmem:[#allocation11 + $0x158] sm:$0xff]
    %v2391 = vld [vmem:[#allocation11 + $0x160] sm:$0xff]
    %v2392 = vld [vmem:[#allocation11 + $0x168] sm:$0xff]
    %v2393 = vld [vmem:[#allocation11 + $0x170] sm:$0xff]
    %v2394 = vld [vmem:[#allocation11 + $0x178] sm:$0xff]
    %v2395 = vld [vmem:[#allocation11 + $0x180] sm:$0xff]
    %v2396 = vld [vmem:[#allocation11 + $0x188] sm:$0xff]
    %v2397 = vld [vmem:[#allocation11 + $0x190] sm:$0xff]
    %v2398 = vld [vmem:[#allocation11 + $0x198] sm:$0xff]
    %v2399 = vld [vmem:[#allocation11 + $0x1a0] sm:$0xff]
    %v2400 = vld [vmem:[#allocation11 + $0x1a8] sm:$0xff]
    %v2401 = vld [vmem:[#allocation11 + $0x1b0] sm:$0xff]
    %v2402 = vld [vmem:[#allocation11 + $0x1b8] sm:$0xff]
    %v2403 = vld [vmem:[#allocation11 + $0x1c0] sm:$0xff]
    %v2404 = vld [vmem:[#allocation11 + $0x1c8] sm:$0xff]
    %v2405 = vld [vmem:[#allocation11 + $0x1d0] sm:$0xff]
    %v2406 = vld [vmem:[#allocation11 + $0x1d8] sm:$0xff]
    %v2407 = vld [vmem:[#allocation11 + $0x1e0] sm:$0xff]
    %v2408 = vld [vmem:[#allocation11 + $0x1e8] sm:$0xff]
    %v2409 = vld [vmem:[#allocation11 + $0x1f0] sm:$0xff]
    %v2410 = vld [vmem:[#allocation11 + $0x1f8] sm:$0xff]
    %v2411 = vld [vmem:[%s6] sm:$0x3]
    %v2413 = vperm.slane %v2411, 0
    %v2414 = vperm.slane %v2411, 1
    %v2481 = vunpack.c.l.b16 %v2347
    %v2482 = vunpack.c.h.b16 %v2347
    %v2483 = vunpack.c.l.b16 %v2348
    %v2484 = vunpack.c.h.b16 %v2348
    %v2485 = vunpack.c.l.b16 %v2349
    %v2486 = vunpack.c.h.b16 %v2349
    %v2487 = vunpack.c.l.b16 %v2350
    %v2488 = vunpack.c.h.b16 %v2350
    %v2489 = vunpack.c.l.b16 %v2351
    %v2490 = vunpack.c.h.b16 %v2351
    %v2491 = vunpack.c.l.b16 %v2352
    %v2492 = vunpack.c.h.b16 %v2352
    %v2493 = vunpack.c.l.b16 %v2353
    %v2494 = vunpack.c.h.b16 %v2353
    %v2495 = vunpack.c.l.b16 %v2354
    %v2496 = vunpack.c.h.b16 %v2354
    %v2497 = vunpack.c.l.b16 %v2355
    %v2498 = vunpack.c.h.b16 %v2355
    %v2499 = vunpack.c.l.b16 %v2356
    %v2500 = vunpack.c.h.b16 %v2356
    %v2501 = vunpack.c.l.b16 %v2357
    %v2502 = vunpack.c.h.b16 %v2357
    %v2503 = vunpack.c.l.b16 %v2358
    %v2504 = vunpack.c.h.b16 %v2358
    %v2505 = vunpack.c.l.b16 %v2359
    %v2506 = vunpack.c.h.b16 %v2359
    %v2507 = vunpack.c.l.b16 %v2360
    %v2508 = vunpack.c.h.b16 %v2360
    %v2509 = vunpack.c.l.b16 %v2361
    %v2510 = vunpack.c.h.b16 %v2361
    %v2511 = vunpack.c.l.b16 %v2362
    %v2512 = vunpack.c.h.b16 %v2362
    %v2513 = vunpack.c.l.b16 %v2363
    %v2514 = vunpack.c.h.b16 %v2363
    %v2515 = vunpack.c.l.b16 %v2364
    %v2516 = vunpack.c.h.b16 %v2364
    %v2517 = vunpack.c.l.b16 %v2365
    %v2518 = vunpack.c.h.b16 %v2365
    %v2519 = vunpack.c.l.b16 %v2366
    %v2520 = vunpack.c.h.b16 %v2366
    %v2521 = vunpack.c.l.b16 %v2367
    %v2522 = vunpack.c.h.b16 %v2367
    %v2523 = vunpack.c.l.b16 %v2368
    %v2524 = vunpack.c.h.b16 %v2368
    %v2525 = vunpack.c.l.b16 %v2369
    %v2526 = vunpack.c.h.b16 %v2369
    %v2527 = vunpack.c.l.b16 %v2370
    %v2528 = vunpack.c.h.b16 %v2370
    %v2529 = vunpack.c.l.b16 %v2371
    %v2530 = vunpack.c.h.b16 %v2371
    %v2531 = vunpack.c.l.b16 %v2372
    %v2532 = vunpack.c.h.b16 %v2372
    %v2533 = vunpack.c.l.b16 %v2373
    %v2534 = vunpack.c.h.b16 %v2373
    %v2535 = vunpack.c.l.b16 %v2374
    %v2536 = vunpack.c.h.b16 %v2374
    %v2537 = vunpack.c.l.b16 %v2375
    %v2538 = vunpack.c.h.b16 %v2375
    %v2539 = vunpack.c.l.b16 %v2376
    %v2540 = vunpack.c.h.b16 %v2376
    %v2541 = vunpack.c.l.b16 %v2377
    %v2542 = vunpack.c.h.b16 %v2377
    %v2543 = vunpack.c.l.b16 %v2378
    %v2544 = vunpack.c.h.b16 %v2378
    %v2545 = vunpack.c.l.b16 %v2379
    %v2546 = vunpack.c.h.b16 %v2379
    %v2547 = vunpack.c.l.b16 %v2380
    %v2548 = vunpack.c.h.b16 %v2380
    %v2549 = vunpack.c.l.b16 %v2381
    %v2550 = vunpack.c.h.b16 %v2381
    %v2551 = vunpack.c.l.b16 %v2382
    %v2552 = vunpack.c.h.b16 %v2382
    %v2553 = vunpack.c.l.b16 %v2383
    %v2554 = vunpack.c.h.b16 %v2383
    %v2555 = vunpack.c.l.b16 %v2384
    %v2556 = vunpack.c.h.b16 %v2384
    %v2557 = vunpack.c.l.b16 %v2385
    %v2558 = vunpack.c.h.b16 %v2385
    %v2559 = vunpack.c.l.b16 %v2386
    %v2560 = vunpack.c.h.b16 %v2386
    %v2561 = vunpack.c.l.b16 %v2387
    %v2562 = vunpack.c.h.b16 %v2387
    %v2563 = vunpack.c.l.b16 %v2388
    %v2564 = vunpack.c.h.b16 %v2388
    %v2565 = vunpack.c.l.b16 %v2389
    %v2566 = vunpack.c.h.b16 %v2389
    %v2567 = vunpack.c.l.b16 %v2390
    %v2568 = vunpack.c.h.b16 %v2390
    %v2569 = vunpack.c.l.b16 %v2391
    %v2570 = vunpack.c.h.b16 %v2391
    %v2571 = vunpack.c.l.b16 %v2392
    %v2572 = vunpack.c.h.b16 %v2392
    %v2573 = vunpack.c.l.b16 %v2393
    %v2574 = vunpack.c.h.b16 %v2393
    %v2575 = vunpack.c.l.b16 %v2394
    %v2576 = vunpack.c.h.b16 %v2394
    %v2577 = vunpack.c.l.b16 %v2395
    %v2578 = vunpack.c.h.b16 %v2395
    %v2579 = vunpack.c.l.b16 %v2396
    %v2580 = vunpack.c.h.b16 %v2396
    %v2581 = vunpack.c.l.b16 %v2397
    %v2582 = vunpack.c.h.b16 %v2397
    %v2583 = vunpack.c.l.b16 %v2398
    %v2584 = vunpack.c.h.b16 %v2398
    %v2585 = vunpack.c.l.b16 %v2399
    %v2586 = vunpack.c.h.b16 %v2399
    %v2587 = vunpack.c.l.b16 %v2400
    %v2588 = vunpack.c.h.b16 %v2400
    %v2589 = vunpack.c.l.b16 %v2401
    %v2590 = vunpack.c.h.b16 %v2401
    %v2591 = vunpack.c.l.b16 %v2402
    %v2592 = vunpack.c.h.b16 %v2402
    %v2593 = vunpack.c.l.b16 %v2403
    %v2594 = vunpack.c.h.b16 %v2403
    %v2595 = vunpack.c.l.b16 %v2404
    %v2596 = vunpack.c.h.b16 %v2404
    %v2597 = vunpack.c.l.b16 %v2405
    %v2598 = vunpack.c.h.b16 %v2405
    %v2599 = vunpack.c.l.b16 %v2406
    %v2600 = vunpack.c.h.b16 %v2406
    %v2601 = vunpack.c.l.b16 %v2407
    %v2602 = vunpack.c.h.b16 %v2407
    %v2603 = vunpack.c.l.b16 %v2408
    %v2604 = vunpack.c.h.b16 %v2408
    %v2605 = vunpack.c.l.b16 %v2409
    %v2606 = vunpack.c.h.b16 %v2409
    %v2607 = vunpack.c.l.b16 %v2410
    %v2608 = vunpack.c.h.b16 %v2410
    %v2609 = vpack.c.b16 %v2483, %v2481
    %v2610 = vpack.c.b16 %v2484, %v2482
    %v2611 = vpack.c.b16 %v2487, %v2485
    %v2612 = vpack.c.b16 %v2488, %v2486
    %v2613 = vpack.c.b16 %v2491, %v2489
    %v2614 = vpack.c.b16 %v2492, %v2490
    %v2615 = vpack.c.b16 %v2495, %v2493
    %v2616 = vpack.c.b16 %v2496, %v2494
    %v2617 = vpack.c.b16 %v2499, %v2497
    %v2618 = vpack.c.b16 %v2500, %v2498
    %v2619 = vpack.c.b16 %v2503, %v2501
    %v2620 = vpack.c.b16 %v2504, %v2502
    %v2621 = vpack.c.b16 %v2507, %v2505
    %v2622 = vpack.c.b16 %v2508, %v2506
    %v2623 = vpack.c.b16 %v2511, %v2509
    %v2624 = vpack.c.b16 %v2512, %v2510
    %v2625 = vpack.c.b16 %v2515, %v2513
    %v2626 = vpack.c.b16 %v2516, %v2514
    %v2627 = vpack.c.b16 %v2519, %v2517
    %v2628 = vpack.c.b16 %v2520, %v2518
    %v2629 = vpack.c.b16 %v2523, %v2521
    %v2630 = vpack.c.b16 %v2524, %v2522
    %v2631 = vpack.c.b16 %v2527, %v2525
    %v2632 = vpack.c.b16 %v2528, %v2526
    %v2633 = vpack.c.b16 %v2531, %v2529
    %v2634 = vpack.c.b16 %v2532, %v2530
    %v2635 = vpack.c.b16 %v2535, %v2533
    %v2636 = vpack.c.b16 %v2536, %v2534
    %v2637 = vpack.c.b16 %v2539, %v2537
    %v2638 = vpack.c.b16 %v2540, %v2538
    %v2639 = vpack.c.b16 %v2543, %v2541
    %v2640 = vpack.c.b16 %v2544, %v2542
    %v2641 = vpack.c.b16 %v2547, %v2545
    %v2642 = vpack.c.b16 %v2548, %v2546
    %v2643 = vpack.c.b16 %v2551, %v2549
    %v2644 = vpack.c.b16 %v2552, %v2550
    %v2645 = vpack.c.b16 %v2555, %v2553
    %v2646 = vpack.c.b16 %v2556, %v2554
    %v2647 = vpack.c.b16 %v2559, %v2557
    %v2648 = vpack.c.b16 %v2560, %v2558
    %v2649 = vpack.c.b16 %v2563, %v2561
    %v2650 = vpack.c.b16 %v2564, %v2562
    %v2651 = vpack.c.b16 %v2567, %v2565
    %v2652 = vpack.c.b16 %v2568, %v2566
    %v2653 = vpack.c.b16 %v2571, %v2569
    %v2654 = vpack.c.b16 %v2572, %v2570
    %v2655 = vpack.c.b16 %v2575, %v2573
    %v2656 = vpack.c.b16 %v2576, %v2574
    %v2657 = vpack.c.b16 %v2579, %v2577
    %v2658 = vpack.c.b16 %v2580, %v2578
    %v2659 = vpack.c.b16 %v2583, %v2581
    %v2660 = vpack.c.b16 %v2584, %v2582
    %v2661 = vpack.c.b16 %v2587, %v2585
    %v2662 = vpack.c.b16 %v2588, %v2586
    %v2663 = vpack.c.b16 %v2591, %v2589
    %v2664 = vpack.c.b16 %v2592, %v2590
    %v2665 = vpack.c.b16 %v2595, %v2593
    %v2666 = vpack.c.b16 %v2596, %v2594
    %v2667 = vpack.c.b16 %v2599, %v2597
    %v2668 = vpack.c.b16 %v2600, %v2598
    %v2669 = vpack.c.b16 %v2603, %v2601
    %v2670 = vpack.c.b16 %v2604, %v2602
    %v2671 = vpack.c.b16 %v2607, %v2605
    %v2672 = vpack.c.b16 %v2608, %v2606
    %2737 = vmatpush.bf16.msra.mxu0 %v2623
    %2738 = vmatpush.bf16.msra.mxu0 %v2621
    %2739 = vmatpush.bf16.msra.mxu0 %v2619
    %2740 = vmatpush.bf16.msra.mxu0 %v2617
    %2741 = vmatpush.bf16.msra.mxu0 %v2615
    %2742 = vmatpush.bf16.msra.mxu0 %v2613
    %2743 = vmatpush.bf16.msra.mxu0 %v2611
    %2744 = vmatpush.bf16.msra.mxu0 %v2609
    %2745 = vmatmul.bf16.gmra.mxu0 %v2343
    %v2746 = vpop.f32.mrf.mxu0
    %v2747 = vadd.f32 %v2413, %v2746
    %v2748 = vpop.f32.mrf.mxu0
    %2749 = vdwg.mxu0
    %2750 = vmatpush.bf16.msra.mxu0 %v2639
    %2751 = vmatpush.bf16.msra.mxu0 %v2637
    %2752 = vmatpush.bf16.msra.mxu0 %v2635
    %2753 = vmatpush.bf16.msra.mxu0 %v2633
    %2754 = vmatpush.bf16.msra.mxu0 %v2631
    %2755 = vmatpush.bf16.msra.mxu0 %v2629
    %2756 = vmatpush.bf16.msra.mxu0 %v2627
    %2757 = vmatpush.bf16.msra.mxu0 %v2625
    %2758 = vmatmul.bf16.gmra.mxu0 %v2344
    %v2759 = vpop.f32.mrf.mxu0
    %v2760 = vadd.f32 %v2747, %v2759
    %v2761 = vpop.f32.mrf.mxu0
    %2762 = vdwg.mxu0
    %2763 = vmatpush.bf16.msra.mxu0 %v2655
    %2764 = vmatpush.bf16.msra.mxu0 %v2653
    %2765 = vmatpush.bf16.msra.mxu0 %v2651
    %2766 = vmatpush.bf16.msra.mxu0 %v2649
    %2767 = vmatpush.bf16.msra.mxu0 %v2647
    %2768 = vmatpush.bf16.msra.mxu0 %v2645
    %2769 = vmatpush.bf16.msra.mxu0 %v2643
    %2770 = vmatpush.bf16.msra.mxu0 %v2641
    %2771 = vmatmul.bf16.gmra.mxu0 %v2345
    %v2772 = vpop.f32.mrf.mxu0
    %v2773 = vadd.f32 %v2760, %v2772
    %v2774 = vpop.f32.mrf.mxu0
    %2775 = vdwg.mxu0
    %2776 = vmatpush.bf16.msra.mxu0 %v2671
    %2777 = vmatpush.bf16.msra.mxu0 %v2669
    %2778 = vmatpush.bf16.msra.mxu0 %v2667
    %2779 = vmatpush.bf16.msra.mxu0 %v2665
    %2780 = vmatpush.bf16.msra.mxu0 %v2663
    %2781 = vmatpush.bf16.msra.mxu0 %v2661
    %2782 = vmatpush.bf16.msra.mxu0 %v2659
    %2783 = vmatpush.bf16.msra.mxu0 %v2657
    %2784 = vmatmul.bf16.gmra.mxu0 %v2346
    %v2785 = vpop.f32.mrf.mxu0
    %v2786 = vadd.f32 %v2773, %v2785
    %v2787 = vpop.f32.mrf.mxu0
    %2788 = vdwg.mxu0
    %2789 = vmatpush.bf16.msra.mxu0 %v2624
    %2790 = vmatpush.bf16.msra.mxu0 %v2622
    %2791 = vmatpush.bf16.msra.mxu0 %v2620
    %2792 = vmatpush.bf16.msra.mxu0 %v2618
    %2793 = vmatpush.bf16.msra.mxu0 %v2616
    %2794 = vmatpush.bf16.msra.mxu0 %v2614
    %2795 = vmatpush.bf16.msra.mxu0 %v2612
    %2796 = vmatpush.bf16.msra.mxu0 %v2610
    %2797 = vmatmul.bf16.gmra.mxu0 %v2343
    %v2798 = vpop.f32.mrf.mxu0
    %v2799 = vadd.f32 %v2414, %v2798
    %v2800 = vpop.f32.mrf.mxu0
    %2801 = vdwg.mxu0
    %2802 = vmatpush.bf16.msra.mxu0 %v2640
    %2803 = vmatpush.bf16.msra.mxu0 %v2638
    %2804 = vmatpush.bf16.msra.mxu0 %v2636
    %2805 = vmatpush.bf16.msra.mxu0 %v2634
    %2806 = vmatpush.bf16.msra.mxu0 %v2632
    %2807 = vmatpush.bf16.msra.mxu0 %v2630
    %2808 = vmatpush.bf16.msra.mxu0 %v2628
    %2809 = vmatpush.bf16.msra.mxu0 %v2626
    %2810 = vmatmul.bf16.gmra.mxu0 %v2344
    %v2811 = vpop.f32.mrf.mxu0
    %v2812 = vadd.f32 %v2799, %v2811
    %v2813 = vpop.f32.mrf.mxu0
    %2814 = vdwg.mxu0
    %2815 = vmatpush.bf16.msra.mxu0 %v2656
    %2816 = vmatpush.bf16.msra.mxu0 %v2654
    %2817 = vmatpush.bf16.msra.mxu0 %v2652
    %2818 = vmatpush.bf16.msra.mxu0 %v2650
    %2819 = vmatpush.bf16.msra.mxu0 %v2648
    %2820 = vmatpush.bf16.msra.mxu0 %v2646
    %2821 = vmatpush.bf16.msra.mxu0 %v2644
    %2822 = vmatpush.bf16.msra.mxu0 %v2642
    %2823 = vmatmul.bf16.gmra.mxu0 %v2345
    %v2824 = vpop.f32.mrf.mxu0
    %v2825 = vadd.f32 %v2812, %v2824
    %v2826 = vpop.f32.mrf.mxu0
    %2827 = vdwg.mxu0
    %2828 = vmatpush.bf16.msra.mxu0 %v2672
    %2829 = vmatpush.bf16.msra.mxu0 %v2670
    %2830 = vmatpush.bf16.msra.mxu0 %v2668
    %2831 = vmatpush.bf16.msra.mxu0 %v2666
    %2832 = vmatpush.bf16.msra.mxu0 %v2664
    %2833 = vmatpush.bf16.msra.mxu0 %v2662
    %2834 = vmatpush.bf16.msra.mxu0 %v2660
    %2835 = vmatpush.bf16.msra.mxu0 %v2658
    %2836 = vmatmul.bf16.gmra.mxu0 %v2346
    %v2837 = vpop.f32.mrf.mxu0
    %v2838 = vadd.f32 %v2825, %v2837
    %v2839 = vpop.f32.mrf.mxu0
    %2840 = vdwg.mxu0
    %v2841 = vmax.f32 %v2786, 0.0
    %v2842 = vmax.f32 %v2838, 0.0
    %v2843 = vpack.c.bf16 %v2841, %v2841
    %v2844 = vpack.c.bf16 %v2842, %v2842
    %v2845 = vld [vmem:[#allocation13] sm:$0xf]
    %v2846 = vld [vmem:[#allocation13 + $0x4] sm:$0xf]
    %v2847 = vld [vmem:[#allocation13 + $0x8] sm:$0xf]
    %v2848 = vld [vmem:[#allocation13 + $0xc] sm:$0xf]
    %v2849 = vld [vmem:[#allocation13 + $0x10] sm:$0xf]
    %v2850 = vld [vmem:[#allocation13 + $0x14] sm:$0xf]
    %v2851 = vld [vmem:[#allocation13 + $0x18] sm:$0xf]
    %v2852 = vld [vmem:[#allocation13 + $0x1c] sm:$0xf]
    %v2853 = vld [vmem:[#allocation13 + $0x20] sm:$0xf]
    %v2854 = vld [vmem:[#allocation13 + $0x24] sm:$0xf]
    %v2855 = vld [vmem:[#allocation13 + $0x28] sm:$0xf]
    %v2856 = vld [vmem:[#allocation13 + $0x2c] sm:$0xf]
    %v2857 = vld [vmem:[#allocation13 + $0x30] sm:$0xf]
    %v2858 = vld [vmem:[#allocation13 + $0x34] sm:$0xf]
    %v2859 = vld [vmem:[#allocation13 + $0x38] sm:$0xf]
    %v2860 = vld [vmem:[#allocation13 + $0x3c] sm:$0xf]
    %v2861 = vld [vmem:[#allocation13 + $0x40] sm:$0xf]
    %v2862 = vld [vmem:[#allocation13 + $0x44] sm:$0xf]
    %v2863 = vld [vmem:[#allocation13 + $0x48] sm:$0xf]
    %v2864 = vld [vmem:[#allocation13 + $0x4c] sm:$0xf]
    %v2865 = vld [vmem:[#allocation13 + $0x50] sm:$0xf]
    %v2866 = vld [vmem:[#allocation13 + $0x54] sm:$0xf]
    %v2867 = vld [vmem:[#allocation13 + $0x58] sm:$0xf]
    %v2868 = vld [vmem:[#allocation13 + $0x5c] sm:$0xf]
    %v2869 = vld [vmem:[#allocation13 + $0x60] sm:$0xf]
    %v2870 = vld [vmem:[#allocation13 + $0x64] sm:$0xf]
    %v2871 = vld [vmem:[#allocation13 + $0x68] sm:$0xf]
    %v2872 = vld [vmem:[#allocation13 + $0x6c] sm:$0xf]
    %v2873 = vld [vmem:[#allocation13 + $0x70] sm:$0xf]
    %v2874 = vld [vmem:[#allocation13 + $0x74] sm:$0xf]
    %v2875 = vld [vmem:[#allocation13 + $0x78] sm:$0xf]
    %v2876 = vld [vmem:[#allocation13 + $0x7c] sm:$0xf]
    %v2877 = vld [vmem:[%s8] sm:$0x1]
    %v2879 = vperm.slane %v2877, 0
    %v2913 = vunpack.c.l.b16 %v2845
    %v2914 = vunpack.c.l.b16 %v2846
    %v2915 = vunpack.c.l.b16 %v2847
    %v2916 = vunpack.c.l.b16 %v2848
    %v2917 = vunpack.c.l.b16 %v2849
    %v2918 = vunpack.c.l.b16 %v2850
    %v2919 = vunpack.c.l.b16 %v2851
    %v2920 = vunpack.c.l.b16 %v2852
    %v2921 = vunpack.c.l.b16 %v2853
    %v2922 = vunpack.c.l.b16 %v2854
    %v2923 = vunpack.c.l.b16 %v2855
    %v2924 = vunpack.c.l.b16 %v2856
    %v2925 = vunpack.c.l.b16 %v2857
    %v2926 = vunpack.c.l.b16 %v2858
    %v2927 = vunpack.c.l.b16 %v2859
    %v2928 = vunpack.c.l.b16 %v2860
    %v2929 = vunpack.c.l.b16 %v2861
    %v2930 = vunpack.c.l.b16 %v2862
    %v2931 = vunpack.c.l.b16 %v2863
    %v2932 = vunpack.c.l.b16 %v2864
    %v2933 = vunpack.c.l.b16 %v2865
    %v2934 = vunpack.c.l.b16 %v2866
    %v2935 = vunpack.c.l.b16 %v2867
    %v2936 = vunpack.c.l.b16 %v2868
    %v2937 = vunpack.c.l.b16 %v2869
    %v2938 = vunpack.c.l.b16 %v2870
    %v2939 = vunpack.c.l.b16 %v2871
    %v2940 = vunpack.c.l.b16 %v2872
    %v2941 = vunpack.c.l.b16 %v2873
    %v2942 = vunpack.c.l.b16 %v2874
    %v2943 = vunpack.c.l.b16 %v2875
    %v2944 = vunpack.c.l.b16 %v2876
    %v2945 = vpack.c.b16 %v2914, %v2913
    %v2946 = vpack.c.b16 %v2916, %v2915
    %v2947 = vpack.c.b16 %v2918, %v2917
    %v2948 = vpack.c.b16 %v2920, %v2919
    %v2949 = vpack.c.b16 %v2922, %v2921
    %v2950 = vpack.c.b16 %v2924, %v2923
    %v2951 = vpack.c.b16 %v2926, %v2925
    %v2952 = vpack.c.b16 %v2928, %v2927
    %v2953 = vpack.c.b16 %v2930, %v2929
    %v2954 = vpack.c.b16 %v2932, %v2931
    %v2955 = vpack.c.b16 %v2934, %v2933
    %v2956 = vpack.c.b16 %v2936, %v2935
    %v2957 = vpack.c.b16 %v2938, %v2937
    %v2958 = vpack.c.b16 %v2940, %v2939
    %v2959 = vpack.c.b16 %v2942, %v2941
    %v2960 = vpack.c.b16 %v2944, %v2943
    %2977 = vmatpush.bf16.msra.mxu0 %v2952
    %2978 = vmatpush.bf16.msra.mxu0 %v2951
    %2979 = vmatpush.bf16.msra.mxu0 %v2950
    %2980 = vmatpush.bf16.msra.mxu0 %v2949
    %2981 = vmatpush.bf16.msra.mxu0 %v2948
    %2982 = vmatpush.bf16.msra.mxu0 %v2947
    %2983 = vmatpush.bf16.msra.mxu0 %v2946
    %2984 = vmatpush.bf16.msra.mxu0 %v2945
    %2985 = vmatmul.bf16.gmra.mxu0 %v2843
    %v2986 = vpop.f32.mrf.mxu0
    %v2987 = vadd.f32 %v2879, %v2986
    %v2988 = vpop.f32.mrf.mxu0
    %2989 = vdwg.mxu0
    %2990 = vmatpush.bf16.msra.mxu0 %v2960
    %2991 = vmatpush.bf16.msra.mxu0 %v2959
    %2992 = vmatpush.bf16.msra.mxu0 %v2958
    %2993 = vmatpush.bf16.msra.mxu0 %v2957
    %2994 = vmatpush.bf16.msra.mxu0 %v2956
    %2995 = vmatpush.bf16.msra.mxu0 %v2955
    %2996 = vmatpush.bf16.msra.mxu0 %v2954
    %2997 = vmatpush.bf16.msra.mxu0 %v2953
    %2998 = vmatmul.bf16.gmra.mxu0 %v2844
    %v2999 = vpop.f32.mrf.mxu0
    %v3000 = vadd.f32 %v2987, %v2999
    %v3001 = vpop.f32.mrf.mxu0
    %3002 = vdwg.mxu0
    %3003 = vmax.xlane.f32.xlu0 %v3000
    %v3004 = vpop.xlane.xlu0 %3003
    %v3005 = vsub.f32 %v3000, %v3004
    %v3006 = vmul.f32 %v3005, 1.442695
    %v3007 = vpow.pop %v3006
    %3008 = vadd.xlane.f32.xlu0 %v3007
    %v3009 = vpop.xlane.xlu0 %3008
    %v3010 = vrcp.pop %v3009
    %v3011 = vmul.f32 %v3007, %v3010
    %3012 = vst [vmem:[#allocation14] sm:$0xff] %v3011
    // Predicated region
    $region66: #{tpu_custom_call.1} parent=1 // pred_check
      _
    $region67: #{tpu_custom_call.1} parent=1 // pred_check_branch
      %3014 = sbr.rel (0) target = $region69
    $region68: #{tpu_custom_call.1} parent=1 // pred_region
      %3016 = vsyncadd [#allocation4], 0
      %s3018 = sshll.u32 [#allocation14], 4
      %s3019 = int_to_ptr.vmem [resolvable:$true] %s3018
      %s3020 = sshll.u32 %s9, 4
      %s3021 = int_to_ptr.hbm [resolvable:$true] %s3020
      %3023 = dma.vmem_to_hbm [thread:$0]  %s3019, 128, %s3021, [#allocation4]
    $region69: #{tpu_custom_call.1} parent=1 // pred_fallthru
      _
    // Predicated region
    $region70: #{tpu_custom_call.1} parent=1 // pred_check
      _
    $region71: #{tpu_custom_call.1} parent=1 // pred_check_branch
      %3025 = sbr.rel (0) target = $region73
    $region72: #{tpu_custom_call.1} parent=1 // pred_region
      %3027 = dma.done [#allocation4], 128
    $region73: #{tpu_custom_call.1} parent=1 // pred_fallthru
      _
    %3028 = vsyncpa [#allocation3], 1
    %3029 = vsyncpa [#allocation6], 1
    %3030 = vsyncpa [#allocation9], 1
    %3031 = vsyncpa [#allocation12], 1
    %3032 = vsyncpa [#allocation4], 1

</llo_original>
